<compile_context>
chip_gen: v7x
topology: tpu7x:2x2x1
jax: 0.10.0
libtpu: 0.0.40
codegen_flags: <defaults>
</compile_context>

<pallas_src>
import jax
import jax.numpy as jnp
from jax import lax
from jax.experimental import pallas as pl
from jax.experimental.pallas import tpu as pltpu


def _pool_conv_kernel(x_ref, w_ref, b_ref, o_ref, pad_ref, col_ref):
    """Processes Nb batch elements per grid step.

    x_ref   : (Nb, Hp, Wp, 4*Cin) f32   four 2x2 pooling taps grouped on the lane dim
    w_ref   : (9*Cin, Cout)       bf16  3x3 conv weights (tap-major) with BN scale folded in
    b_ref   : (1, Cout)           f32   folded BatchNorm bias
    o_ref   : (Nb, Hp, Wp, Cout)  f32
    pad_ref : VMEM (Nb, Hp+2, Wp+2, Cin) bf16   zero-padded pooled activations
    col_ref : VMEM (Nb, Hp, Wp, 9*Cin)   bf16   im2col patch buffer
    """
    Nb, Hp, Wp, C4 = x_ref.shape
    Cin = C4 // 4
    Cout = w_ref.shape[1]

    # --- MaxPool2d(2,2, ceil_mode): max over the four lane-grouped taps (VPU, f32) ---
    x = x_ref[...]
    pooled = jnp.maximum(
        jnp.maximum(x[..., 0 * Cin:1 * Cin], x[..., 1 * Cin:2 * Cin]),
        jnp.maximum(x[..., 2 * Cin:3 * Cin], x[..., 3 * Cin:4 * Cin]))

    # --- conv padding=1: refresh only the 1-wide zero border each step; the interior
    #     is fully overwritten (scratch persists across grid steps / per-core) ---
    zrow = jnp.zeros((Nb, 1, Wp + 2, Cin), pad_ref.dtype)
    zcol = jnp.zeros((Nb, Hp, 1, Cin), pad_ref.dtype)
    pad_ref[:, 0:1, :, :] = zrow
    pad_ref[:, Hp + 1:Hp + 2, :, :] = zrow
    pad_ref[:, 1:Hp + 1, 0:1, :] = zcol
    pad_ref[:, 1:Hp + 1, Wp + 1:Wp + 2, :] = zcol
    pad_ref[:, 1:Hp + 1, 1:Wp + 1, :] = pooled.astype(pad_ref.dtype)

    # --- im2col: gather the 9 shifted taps once into a single patch buffer ---
    for t in range(9):
        dy, dx = divmod(t, 3)
        col_ref[:, :, :, t * Cin:(t + 1) * Cin] = pad_ref[:, dy:dy + Hp, dx:dx + Wp, :]

    # --- one fused bf16 MXU matmul: (Nb*Hp*Wp, 9*Cin) x (9*Cin, Cout) -> f32 ---
    patch = col_ref[...].reshape(Nb * Hp * Wp, 9 * Cin)
    acc = jnp.dot(patch, w_ref[...], preferred_element_type=jnp.float32)

    # --- folded-BN bias + ReLU (scale already folded into the weights) ---
    y = jnp.maximum(acc + b_ref[...], 0.0)
    o_ref[...] = y.reshape(Nb, Hp, Wp, Cout).astype(o_ref.dtype)


def _pick_batch_block(n, hp, wp, cin, cout, budget_bytes=24 * 1024 * 1024):
    """Largest divisor of n whose per-step VMEM footprint fits the budget."""
    per = hp * wp * 4 * cin * 4 * 2          # input block (f32), double-buffered
    per += hp * wp * cout * 4 * 2            # output block (f32), double-buffered
    per += (hp + 2) * (wp + 2) * cin * 2     # pad scratch (bf16)
    per += hp * wp * 9 * cin * 2             # im2col scratch (bf16)
    nb = 1
    for d in range(1, n + 1):
        if n % d == 0 and d * per <= budget_bytes:
            nb = d
    return nb


def pool_conv(x_nchw, w_hwio, scale, bias):
    """PoolConv forward. x_nchw: (N, Cin, H, W) -> (N, Cout, ceil(H/2), ceil(W/2))."""
    N, Cin, H, W = x_nchw.shape
    Cout = w_hwio.shape[-1]
    Hp, Wp = -(-H // 2), -(-W // 2)                       # ceil_mode=True

    # ---- layout glue: one transpose pass that also groups the 2x2 taps on lanes ----
    x = jnp.transpose(x_nchw, (0, 2, 3, 1)).astype(jnp.float32)        # NHWC
    # ceil-mode pad with -inf: each 2x2 window keeps >=1 real element, so -inf never
    # survives the max (pad is at most 1 row / 1 col).
    x = jnp.pad(x, ((0, 0), (0, 2 * Hp - H), (0, 2 * Wp - W), (0, 0)),
                constant_values=-jnp.inf)
    x = x.reshape(N, Hp, 2, Wp, 2, Cin)
    x = jnp.transpose(x, (0, 1, 3, 2, 4, 5)).reshape(N, Hp, Wp, 4 * Cin)

    # fold BN scale into the conv weights (per-Cout scale commutes with the conv);
    # tap-major (9*Cin, Cout) rows; bf16 operands for the MXU.
    w9 = (w_hwio * scale[None, None, None, :]).reshape(9 * Cin, Cout).astype(jnp.bfloat16)
    b2 = bias.reshape(1, Cout).astype(jnp.float32)

    Nb = _pick_batch_block(N, Hp, Wp, Cin, Cout)
    grid = (N // Nb,)

    out = pl.pallas_call(
        _pool_conv_kernel,
        out_shape=jax.ShapeDtypeStruct((N, Hp, Wp, Cout), jnp.float32),
        grid=grid,
        in_specs=[
            pl.BlockSpec((Nb, Hp, Wp, 4 * Cin), lambda n: (n, 0, 0, 0)),
            pl.BlockSpec((9 * Cin, Cout), lambda n: (0, 0)),
            pl.BlockSpec((1, Cout), lambda n: (0, 0)),
        ],
        out_specs=pl.BlockSpec((Nb, Hp, Wp, Cout), lambda n: (n, 0, 0, 0)),
        scratch_shapes=[
            pltpu.VMEM((Nb, Hp + 2, Wp + 2, Cin), jnp.bfloat16),
            pltpu.VMEM((Nb, Hp, Wp, 9 * Cin), jnp.bfloat16),
        ],
        compiler_params=pltpu.CompilerParams(
            dimension_semantics=("parallel",),   # batch elems independent (v7x: 2 TCs)
            vmem_limit_bytes=48 * 1024 * 1024,
        ),
    )(x, w9, b2)

    return jnp.transpose(out, (0, 3, 1, 2))               # back to NCHW


def pool_conv_reference(x_nchw, w_hwio, scale, bias):
    """Pure-JAX reference (NCHW in/out) for validation."""
    N, Cin, H, W = x_nchw.shape
    Hp, Wp = -(-H // 2), -(-W // 2)
    x = jnp.transpose(x_nchw, (0, 2, 3, 1))
    pooled = lax.reduce_window(x, -jnp.inf, lax.max,
                               (1, 2, 2, 1), (1, 2, 2, 1),
                               ((0, 0), (0, 2 * Hp - H), (0, 2 * Wp - W), (0, 0)))
    conv = lax.conv_general_dilated(pooled, w_hwio, (1, 1), 'SAME',
                                    dimension_numbers=('NHWC', 'HWIO', 'NHWC'))
    y = jnp.maximum(conv * scale[None, None, None, :] + bias[None, None, None, :], 0.0)
    return jnp.transpose(y, (0, 3, 1, 2))


if __name__ == "__main__":
    N, Cin, Cout, H, W = 2, 4, 8, 16, 16
    key = jax.random.PRNGKey(0)
    k1, k2, k3, k4, k5, k6 = jax.random.split(key, 6)

    x = jax.random.normal(k1, (N, Cin, H, W), jnp.float32)
    w = jax.random.normal(k2, (3, 3, Cin, Cout), jnp.float32) * 0.1   # HWIO
    gamma = jax.random.uniform(k3, (Cout,), jnp.float32, 0.5, 1.5)
    beta = jax.random.normal(k4, (Cout,), jnp.float32) * 0.1
    r_mean = jax.random.normal(k5, (Cout,), jnp.float32) * 0.1
    r_var = jax.random.uniform(k6, (Cout,), jnp.float32, 0.5, 1.5)
    eps = 1e-5

    # fold BatchNorm (eval mode) into per-channel scale/bias
    scale = gamma / jnp.sqrt(r_var + eps)
    bias = beta - r_mean * scale

    out = pool_conv(x, w, scale, bias)
    out = jax.block_until_ready(out)

    ref = pool_conv_reference(x, w, scale, bias)
    if not jnp.allclose(out, ref, atol=5e-2, rtol=5e-2):   # bf16 MXU operands
        max_err = jnp.max(jnp.abs(out - ref))
        raise AssertionError(f"kernel mismatch, max abs err = {max_err}")

    print("KERNEL_OK")
</pallas_src>

<mosaic_0001>
module attributes {stable_mosaic.version = 11 : i64} {
  func.func @_pool_conv_kernel(%arg0: i32, %arg1: memref<2x8x8x16xf32, #tpu.memory_space<vmem>>, %arg2: memref<36x8xbf16, #tpu.memory_space<vmem>>, %arg3: memref<1x8xf32, #tpu.memory_space<vmem>>, %arg4: memref<2x8x8x8xf32, #tpu.memory_space<vmem>>, %arg5: memref<2x10x10x4xbf16, #tpu.memory_space<vmem>>, %arg6: memref<2x8x8x36xbf16, #tpu.memory_space<vmem>>) attributes {dimension_semantics = [#tpu.dimension_semantics<parallel>], iteration_bounds = array<i64: 1>, scalar_prefetch = 0 : i64, scratch_operands = 2 : i64, tpu.core_type = #tpu.core_type<tc>, window_params = [{transform_indices = @transform_0, window_bounds = array<i64: 2, 8, 8, 16>}, {pipeline_mode = #tpu.pipeline_mode<synchronous>, transform_indices = @transform_1, window_bounds = array<i64: 36, 8>}, {pipeline_mode = #tpu.pipeline_mode<synchronous>, transform_indices = @transform_2, window_bounds = array<i64: 1, 8>}, {transform_indices = @transform_3, window_bounds = array<i64: 2, 8, 8, 8>}]} {
    %c0 = arith.constant 0 : index
    %c0_0 = arith.constant 0 : index
    %c0_1 = arith.constant 0 : index
    %c0_2 = arith.constant 0 : index
    %0 = vector.load %arg1[%c0, %c0_0, %c0_1, %c0_2] : memref<2x8x8x16xf32, #tpu.memory_space<vmem>>, vector<2x8x8x16xf32>
    %1 = vector.extract_strided_slice %0 {offsets = [0, 0, 0, 0], sizes = [2, 8, 8, 4], strides = [1, 1, 1, 1]} : vector<2x8x8x16xf32> to vector<2x8x8x4xf32>
    %2 = vector.extract_strided_slice %0 {offsets = [0, 0, 0, 4], sizes = [2, 8, 8, 4], strides = [1, 1, 1, 1]} : vector<2x8x8x16xf32> to vector<2x8x8x4xf32>
    %3 = arith.maximumf %1, %2 : vector<2x8x8x4xf32>
    %4 = vector.extract_strided_slice %0 {offsets = [0, 0, 0, 8], sizes = [2, 8, 8, 4], strides = [1, 1, 1, 1]} : vector<2x8x8x16xf32> to vector<2x8x8x4xf32>
    %5 = vector.extract_strided_slice %0 {offsets = [0, 0, 0, 12], sizes = [2, 8, 8, 4], strides = [1, 1, 1, 1]} : vector<2x8x8x16xf32> to vector<2x8x8x4xf32>
    %6 = arith.maximumf %4, %5 : vector<2x8x8x4xf32>
    %7 = arith.maximumf %3, %6 : vector<2x8x8x4xf32>
    %cst = arith.constant 0.000000e+00 : bf16
    %8 = vector.broadcast %cst : bf16 to vector<2x1x10x4xbf16>
    %cst_3 = arith.constant 0.000000e+00 : bf16
    %9 = vector.broadcast %cst_3 : bf16 to vector<2x8x1x4xbf16>
    %c0_4 = arith.constant 0 : index
    %c0_5 = arith.constant 0 : index
    %c0_6 = arith.constant 0 : index
    %c0_7 = arith.constant 0 : index
    %10 = vector.load %arg5[%c0_4, %c0_5, %c0_6, %c0_7] : memref<2x10x10x4xbf16, #tpu.memory_space<vmem>>, vector<2x1x10x4xbf16>
    tpu.vector_store %arg5[%c0_4, %c0_5, %c0_6, %c0_7], %8 {strides = array<i32>} : memref<2x10x10x4xbf16, #tpu.memory_space<vmem>>, vector<2x1x10x4xbf16>,
    %c0_8 = arith.constant 0 : index
    %c9 = arith.constant 9 : index
    %c0_9 = arith.constant 0 : index
    %c0_10 = arith.constant 0 : index
    %11 = vector.load %arg5[%c0_8, %c9, %c0_9, %c0_10] : memref<2x10x10x4xbf16, #tpu.memory_space<vmem>>, vector<2x1x10x4xbf16>
    tpu.vector_store %arg5[%c0_8, %c9, %c0_9, %c0_10], %8 {strides = array<i32>} : memref<2x10x10x4xbf16, #tpu.memory_space<vmem>>, vector<2x1x10x4xbf16>,
    %c0_11 = arith.constant 0 : index
    %c1 = arith.constant 1 : index
    %c0_12 = arith.constant 0 : index
    %c0_13 = arith.constant 0 : index
    %12 = vector.load %arg5[%c0_11, %c1, %c0_12, %c0_13] : memref<2x10x10x4xbf16, #tpu.memory_space<vmem>>, vector<2x8x1x4xbf16>
    tpu.vector_store %arg5[%c0_11, %c1, %c0_12, %c0_13], %9 {strides = array<i32>} : memref<2x10x10x4xbf16, #tpu.memory_space<vmem>>, vector<2x8x1x4xbf16>,
    %c0_14 = arith.constant 0 : index
    %c1_15 = arith.constant 1 : index
    %c9_16 = arith.constant 9 : index
    %c0_17 = arith.constant 0 : index
    %13 = vector.load %arg5[%c0_14, %c1_15, %c9_16, %c0_17] : memref<2x10x10x4xbf16, #tpu.memory_space<vmem>>, vector<2x8x1x4xbf16>
    tpu.vector_store %arg5[%c0_14, %c1_15, %c9_16, %c0_17], %9 {strides = array<i32>} : memref<2x10x10x4xbf16, #tpu.memory_space<vmem>>, vector<2x8x1x4xbf16>,
    %14 = arith.truncf %7 : vector<2x8x8x4xf32> to vector<2x8x8x4xbf16>
    %c0_18 = arith.constant 0 : index
    %c1_19 = arith.constant 1 : index
    %c1_20 = arith.constant 1 : index
    %c0_21 = arith.constant 0 : index
    %15 = vector.load %arg5[%c0_18, %c1_19, %c1_20, %c0_21] : memref<2x10x10x4xbf16, #tpu.memory_space<vmem>>, vector<2x8x8x4xbf16>
    tpu.vector_store %arg5[%c0_18, %c1_19, %c1_20, %c0_21], %14 {strides = array<i32>} : memref<2x10x10x4xbf16, #tpu.memory_space<vmem>>, vector<2x8x8x4xbf16>,
    %c0_22 = arith.constant 0 : index
    %c0_23 = arith.constant 0 : index
    %c0_24 = arith.constant 0 : index
    %c0_25 = arith.constant 0 : index
    %16 = vector.load %arg5[%c0_22, %c0_23, %c0_24, %c0_25] : memref<2x10x10x4xbf16, #tpu.memory_space<vmem>>, vector<2x8x8x4xbf16>
    %c0_26 = arith.constant 0 : index
    %c0_27 = arith.constant 0 : index
    %c0_28 = arith.constant 0 : index
    %c0_29 = arith.constant 0 : index
    %17 = vector.load %arg6[%c0_26, %c0_27, %c0_28, %c0_29] : memref<2x8x8x36xbf16, #tpu.memory_space<vmem>>, vector<2x8x8x4xbf16>
    tpu.vector_store %arg6[%c0_26, %c0_27, %c0_28, %c0_29], %16 {strides = array<i32>} : memref<2x8x8x36xbf16, #tpu.memory_space<vmem>>, vector<2x8x8x4xbf16>,
    %c0_30 = arith.constant 0 : index
    %c0_31 = arith.constant 0 : index
    %c1_32 = arith.constant 1 : index
    %c0_33 = arith.constant 0 : index
    %18 = vector.load %arg5[%c0_30, %c0_31, %c1_32, %c0_33] : memref<2x10x10x4xbf16, #tpu.memory_space<vmem>>, vector<2x8x8x4xbf16>
    %c0_34 = arith.constant 0 : index
    %c0_35 = arith.constant 0 : index
    %c0_36 = arith.constant 0 : index
    %c4 = arith.constant 4 : index
    %19 = vector.load %arg6[%c0_34, %c0_35, %c0_36, %c4] : memref<2x8x8x36xbf16, #tpu.memory_space<vmem>>, vector<2x8x8x4xbf16>
    tpu.vector_store %arg6[%c0_34, %c0_35, %c0_36, %c4], %18 {strides = array<i32>} : memref<2x8x8x36xbf16, #tpu.memory_space<vmem>>, vector<2x8x8x4xbf16>,
    %c0_37 = arith.constant 0 : index
    %c0_38 = arith.constant 0 : index
    %c2 = arith.constant 2 : index
    %c0_39 = arith.constant 0 : index
    %20 = vector.load %arg5[%c0_37, %c0_38, %c2, %c0_39] : memref<2x10x10x4xbf16, #tpu.memory_space<vmem>>, vector<2x8x8x4xbf16>
    %c0_40 = arith.constant 0 : index
    %c0_41 = arith.constant 0 : index
    %c0_42 = arith.constant 0 : index
    %c8 = arith.constant 8 : index
    %21 = vector.load %arg6[%c0_40, %c0_41, %c0_42, %c8] : memref<2x8x8x36xbf16, #tpu.memory_space<vmem>>, vector<2x8x8x4xbf16>
    tpu.vector_store %arg6[%c0_40, %c0_41, %c0_42, %c8], %20 {strides = array<i32>} : memref<2x8x8x36xbf16, #tpu.memory_space<vmem>>, vector<2x8x8x4xbf16>,
    %c0_43 = arith.constant 0 : index
    %c1_44 = arith.constant 1 : index
    %c0_45 = arith.constant 0 : index
    %c0_46 = arith.constant 0 : index
    %22 = vector.load %arg5[%c0_43, %c1_44, %c0_45, %c0_46] : memref<2x10x10x4xbf16, #tpu.memory_space<vmem>>, vector<2x8x8x4xbf16>
    %c0_47 = arith.constant 0 : index
    %c0_48 = arith.constant 0 : index
    %c0_49 = arith.constant 0 : index
    %c12 = arith.constant 12 : index
    %23 = vector.load %arg6[%c0_47, %c0_48, %c0_49, %c12] : memref<2x8x8x36xbf16, #tpu.memory_space<vmem>>, vector<2x8x8x4xbf16>
    tpu.vector_store %arg6[%c0_47, %c0_48, %c0_49, %c12], %22 {strides = array<i32>} : memref<2x8x8x36xbf16, #tpu.memory_space<vmem>>, vector<2x8x8x4xbf16>,
    %c0_50 = arith.constant 0 : index
    %c1_51 = arith.constant 1 : index
    %c1_52 = arith.constant 1 : index
    %c0_53 = arith.constant 0 : index
    %24 = vector.load %arg5[%c0_50, %c1_51, %c1_52, %c0_53] : memref<2x10x10x4xbf16, #tpu.memory_space<vmem>>, vector<2x8x8x4xbf16>
    %c0_54 = arith.constant 0 : index
    %c0_55 = arith.constant 0 : index
    %c0_56 = arith.constant 0 : index
    %c16 = arith.constant 16 : index
    %25 = vector.load %arg6[%c0_54, %c0_55, %c0_56, %c16] : memref<2x8x8x36xbf16, #tpu.memory_space<vmem>>, vector<2x8x8x4xbf16>
    tpu.vector_store %arg6[%c0_54, %c0_55, %c0_56, %c16], %24 {strides = array<i32>} : memref<2x8x8x36xbf16, #tpu.memory_space<vmem>>, vector<2x8x8x4xbf16>,
    %c0_57 = arith.constant 0 : index
    %c1_58 = arith.constant 1 : index
    %c2_59 = arith.constant 2 : index
    %c0_60 = arith.constant 0 : index
    %26 = vector.load %arg5[%c0_57, %c1_58, %c2_59, %c0_60] : memref<2x10x10x4xbf16, #tpu.memory_space<vmem>>, vector<2x8x8x4xbf16>
    %c0_61 = arith.constant 0 : index
    %c0_62 = arith.constant 0 : index
    %c0_63 = arith.constant 0 : index
    %c20 = arith.constant 20 : index
    %27 = vector.load %arg6[%c0_61, %c0_62, %c0_63, %c20] : memref<2x8x8x36xbf16, #tpu.memory_space<vmem>>, vector<2x8x8x4xbf16>
    tpu.vector_store %arg6[%c0_61, %c0_62, %c0_63, %c20], %26 {strides = array<i32>} : memref<2x8x8x36xbf16, #tpu.memory_space<vmem>>, vector<2x8x8x4xbf16>,
    %c0_64 = arith.constant 0 : index
    %c2_65 = arith.constant 2 : index
    %c0_66 = arith.constant 0 : index
    %c0_67 = arith.constant 0 : index
    %28 = vector.load %arg5[%c0_64, %c2_65, %c0_66, %c0_67] : memref<2x10x10x4xbf16, #tpu.memory_space<vmem>>, vector<2x8x8x4xbf16>
    %c0_68 = arith.constant 0 : index
    %c0_69 = arith.constant 0 : index
    %c0_70 = arith.constant 0 : index
    %c24 = arith.constant 24 : index
    %29 = vector.load %arg6[%c0_68, %c0_69, %c0_70, %c24] : memref<2x8x8x36xbf16, #tpu.memory_space<vmem>>, vector<2x8x8x4xbf16>
    tpu.vector_store %arg6[%c0_68, %c0_69, %c0_70, %c24], %28 {strides = array<i32>} : memref<2x8x8x36xbf16, #tpu.memory_space<vmem>>, vector<2x8x8x4xbf16>,
    %c0_71 = arith.constant 0 : index
    %c2_72 = arith.constant 2 : index
    %c1_73 = arith.constant 1 : index
    %c0_74 = arith.constant 0 : index
    %30 = vector.load %arg5[%c0_71, %c2_72, %c1_73, %c0_74] : memref<2x10x10x4xbf16, #tpu.memory_space<vmem>>, vector<2x8x8x4xbf16>
    %c0_75 = arith.constant 0 : index
    %c0_76 = arith.constant 0 : index
    %c0_77 = arith.constant 0 : index
    %c28 = arith.constant 28 : index
    %31 = vector.load %arg6[%c0_75, %c0_76, %c0_77, %c28] : memref<2x8x8x36xbf16, #tpu.memory_space<vmem>>, vector<2x8x8x4xbf16>
    tpu.vector_store %arg6[%c0_75, %c0_76, %c0_77, %c28], %30 {strides = array<i32>} : memref<2x8x8x36xbf16, #tpu.memory_space<vmem>>, vector<2x8x8x4xbf16>,
    %c0_78 = arith.constant 0 : index
    %c2_79 = arith.constant 2 : index
    %c2_80 = arith.constant 2 : index
    %c0_81 = arith.constant 0 : index
    %32 = vector.load %arg5[%c0_78, %c2_79, %c2_80, %c0_81] : memref<2x10x10x4xbf16, #tpu.memory_space<vmem>>, vector<2x8x8x4xbf16>
    %c0_82 = arith.constant 0 : index
    %c0_83 = arith.constant 0 : index
    %c0_84 = arith.constant 0 : index
    %c32 = arith.constant 32 : index
    %33 = vector.load %arg6[%c0_82, %c0_83, %c0_84, %c32] : memref<2x8x8x36xbf16, #tpu.memory_space<vmem>>, vector<2x8x8x4xbf16>
    tpu.vector_store %arg6[%c0_82, %c0_83, %c0_84, %c32], %32 {strides = array<i32>} : memref<2x8x8x36xbf16, #tpu.memory_space<vmem>>, vector<2x8x8x4xbf16>,
    %c0_85 = arith.constant 0 : index
    %c0_86 = arith.constant 0 : index
    %c0_87 = arith.constant 0 : index
    %c0_88 = arith.constant 0 : index
    %34 = vector.load %arg6[%c0_85, %c0_86, %c0_87, %c0_88] : memref<2x8x8x36xbf16, #tpu.memory_space<vmem>>, vector<2x8x8x36xbf16>
    %35 = vector.shape_cast %34 : vector<2x8x8x36xbf16> to vector<128x36xbf16>
    %c0_89 = arith.constant 0 : index
    %c0_90 = arith.constant 0 : index
    %36 = vector.load %arg2[%c0_89, %c0_90] : memref<36x8xbf16, #tpu.memory_space<vmem>>, vector<36x8xbf16>
    %cst_91 = arith.constant dense<0.000000e+00> : vector<128x8xf32>
    %37 = tpu.matmul %35, %36, %cst_91 {dimension_numbers = #tpu.dot_dimension_numbers<[1], [0], [0], [1], [0, 0, 1, 1], [], []>} : vector<128x36xbf16>, vector<36x8xbf16>, vector<128x8xf32> -> vector<128x8xf32>
    %c0_92 = arith.constant 0 : index
    %c0_93 = arith.constant 0 : index
    %38 = vector.load %arg3[%c0_92, %c0_93] : memref<1x8xf32, #tpu.memory_space<vmem>>, vector<1x8xf32>
    %39 = vector.broadcast %38 : vector<1x8xf32> to vector<128x8xf32>
    %40 = arith.addf %37, %39 : vector<128x8xf32>
    %cst_94 = arith.constant 0.000000e+00 : f32
    %41 = vector.broadcast %cst_94 : f32 to vector<128x8xf32>
    %42 = arith.maximumf %40, %41 : vector<128x8xf32>
    %43 = vector.shape_cast %42 : vector<128x8xf32> to vector<2x8x8x8xf32>
    %c0_95 = arith.constant 0 : index
    %c0_96 = arith.constant 0 : index
    %c0_97 = arith.constant 0 : index
    %c0_98 = arith.constant 0 : index
    %44 = vector.load %arg4[%c0_95, %c0_96, %c0_97, %c0_98] : memref<2x8x8x8xf32, #tpu.memory_space<vmem>>, vector<2x8x8x8xf32>
    tpu.vector_store %arg4[%c0_95, %c0_96, %c0_97, %c0_98], %43 {strides = array<i32>} : memref<2x8x8x8xf32, #tpu.memory_space<vmem>>, vector<2x8x8x8xf32>,
    return
  }
  func.func @transform_0(%arg0: i32) -> (i32, i32, i32, i32) {
    %c0_i32 = arith.constant 0 : i32
    %c0_i32_0 = arith.constant 0 : i32
    %c0_i32_1 = arith.constant 0 : i32
    %c0_i32_2 = arith.constant 0 : i32
    return %arg0, %c0_i32, %c0_i32_0, %c0_i32_1 : i32, i32, i32, i32
  }
  func.func @transform_1(%arg0: i32) -> (i32, i32) {
    %c0_i32 = arith.constant 0 : i32
    %c0_i32_0 = arith.constant 0 : i32
    %c0_i32_1 = arith.constant 0 : i32
    return %c0_i32, %c0_i32_0 : i32, i32
  }
  func.func @transform_2(%arg0: i32) -> (i32, i32) {
    %c0_i32 = arith.constant 0 : i32
    %c0_i32_0 = arith.constant 0 : i32
    %c0_i32_1 = arith.constant 0 : i32
    return %c0_i32, %c0_i32_0 : i32, i32
  }
  func.func @transform_3(%arg0: i32) -> (i32, i32, i32, i32) {
    %c0_i32 = arith.constant 0 : i32
    %c0_i32_0 = arith.constant 0 : i32
    %c0_i32_1 = arith.constant 0 : i32
    %c0_i32_2 = arith.constant 0 : i32
    return %arg0, %c0_i32, %c0_i32_0, %c0_i32_1 : i32, i32, i32, i32
  }
}

</mosaic_0001>

<llo_original>
// kernel: tpu_custom_call.1
$region0: #{tpu_custom_call.1}
  #allocation0 [shape = 'u32[]', space=smem, size = 0x4, offset = 0x4, fixed_abs, tag = 'smem constant byte address 0x4 - core index']
  #allocation1 [shape = 'u32[144,128]{1,0:T(1,128)}', space=vmem, size = 0x12000, scoped, tag = 'internal scratch']
  #allocation2 [shape = 'bf16[2,10,10,4]{3,2,1,0:T(8,128)(2,1)}', space=vmem, size = 0x14000, scoped, tag = 'scratch operand']
  #allocation3 [shape = 'bf16[2,8,8,36]{3,2,1,0:T(8,128)(2,1)}', space=vmem, size = 0x8000, scoped, tag = 'scratch operand']
  %s0 = inlined_call_operand.hbm [shape: f32[2,8,8,16], index: 0, kind: input, shape index: {}]
  %s1 = inlined_call_operand.vmem [shape: bf16[36,8], index: 1, kind: input, shape index: {}]
  %s2 = inlined_call_operand.vmem [shape: f32[1,8], index: 2, kind: input, shape index: {}]
  %s3 = inlined_call_operand.hbm [shape: f32[2,8,8,8], index: 3, kind: output, shape index: {}]
  %s4 = sld [smem:[#allocation0]]
  $region26: #{tpu_custom_call.1} parent=0
    _
  %s6 = ssub.s32 1, %s4
  %s7 = scalar_select 0, %s6, %s4
  $region1: #{tpu_custom_call.1} parent=0
    #allocation4 [shape = 'u8[65536]{0}', space=vmem, size = 0x10000, scoped, tag = 'input window, operand 0, single buffered']
    #allocation5 [shape = 's32[1]{0}', space=sflag, size = 0x4, scoped, tag = 'scoped memory for tpu_custom_call.1']
    #allocation6 [shape = 's32[1]{0}', space=sflag, size = 0x4, scoped, tag = 'scoped memory for tpu_custom_call.1']
    #allocation7 [shape = 'u8[65536]{0}', space=vmem, size = 0x10000, scoped, tag = 'output window, operand 0, single buffered']
    %8 = vsyncpa [#allocation5], 0
    %9 = vsyncpa [#allocation6], 0
    // Predicated region
    $region2: #{tpu_custom_call.1} parent=1 // pred_check
      _
    $region3: #{tpu_custom_call.1} parent=1 // pred_check_branch
      %11 = sbr.rel (0) target = $region5
    $region4: #{tpu_custom_call.1} parent=1 // pred_region
      %s13 = ssub.s32 2048, 2048
      %14 = vsyncadd [#allocation5], %s13
      %s15 = sshll.u32 [#allocation4], 4
      %s16 = int_to_ptr.vmem [resolvable:$true] %s15
      %21 = dma.hbm_to_vmem [thread:$0]  %s0, 2048, %s16, [#allocation5], 128, 128, 8
    $region5: #{tpu_custom_call.1} parent=1 // pred_fallthru
      _
    // Predicated region
    $region6: #{tpu_custom_call.1} parent=1 // pred_check
      _
    $region7: #{tpu_custom_call.1} parent=1 // pred_check_branch
      %23 = sbr.rel (0) target = $region9
    $region8: #{tpu_custom_call.1} parent=1 // pred_region
      _
    $region9: #{tpu_custom_call.1} parent=1 // pred_fallthru
      _
    // Predicated region
    $region10: #{tpu_custom_call.1} parent=1 // pred_check
      _
    $region11: #{tpu_custom_call.1} parent=1 // pred_check_branch
      %25 = sbr.rel (0) target = $region13
    $region12: #{tpu_custom_call.1} parent=1 // pred_region
      _
    $region13: #{tpu_custom_call.1} parent=1 // pred_fallthru
      _
    // Predicated region
    $region14: #{tpu_custom_call.1} parent=1 // pred_check
      _
    $region15: #{tpu_custom_call.1} parent=1 // pred_check_branch
      %27 = sbr.rel (0) target = $region17
    $region16: #{tpu_custom_call.1} parent=1 // pred_region
      %28 = dma.done [#allocation5], 2048
    $region17: #{tpu_custom_call.1} parent=1 // pred_fallthru
      _
    %v30 = vld [vmem:[#allocation4] sm:$0xff]
    %v31 = vld [vmem:[#allocation4 + $0x8] sm:$0xff]
    %v32 = vld [vmem:[#allocation4 + $0x10] sm:$0xff]
    %v33 = vld [vmem:[#allocation4 + $0x18] sm:$0xff]
    %v34 = vld [vmem:[#allocation4 + $0x20] sm:$0xff]
    %v35 = vld [vmem:[#allocation4 + $0x28] sm:$0xff]
    %v36 = vld [vmem:[#allocation4 + $0x30] sm:$0xff]
    %v37 = vld [vmem:[#allocation4 + $0x38] sm:$0xff]
    %v38 = vld [vmem:[#allocation4 + $0x40] sm:$0xff]
    %v39 = vld [vmem:[#allocation4 + $0x48] sm:$0xff]
    %v40 = vld [vmem:[#allocation4 + $0x50] sm:$0xff]
    %v41 = vld [vmem:[#allocation4 + $0x58] sm:$0xff]
    %v42 = vld [vmem:[#allocation4 + $0x60] sm:$0xff]
    %v43 = vld [vmem:[#allocation4 + $0x68] sm:$0xff]
    %v44 = vld [vmem:[#allocation4 + $0x70] sm:$0xff]
    %v45 = vld [vmem:[#allocation4 + $0x78] sm:$0xff]
    %62 = vrot.lane.b32.xlu0 %v30, 124
    %v63 = vpop.permute.xlu0 %62
    %64 = vrot.lane.b32.xlu0 %v31, 124
    %v65 = vpop.permute.xlu0 %64
    %66 = vrot.lane.b32.xlu0 %v32, 124
    %v67 = vpop.permute.xlu0 %66
    %68 = vrot.lane.b32.xlu0 %v33, 124
    %v69 = vpop.permute.xlu0 %68
    %70 = vrot.lane.b32.xlu0 %v34, 124
    %v71 = vpop.permute.xlu0 %70
    %72 = vrot.lane.b32.xlu0 %v35, 124
    %v73 = vpop.permute.xlu0 %72
    %74 = vrot.lane.b32.xlu0 %v36, 124
    %v75 = vpop.permute.xlu0 %74
    %76 = vrot.lane.b32.xlu0 %v37, 124
    %v77 = vpop.permute.xlu0 %76
    %78 = vrot.lane.b32.xlu0 %v38, 124
    %v79 = vpop.permute.xlu0 %78
    %80 = vrot.lane.b32.xlu0 %v39, 124
    %v81 = vpop.permute.xlu0 %80
    %82 = vrot.lane.b32.xlu0 %v40, 124
    %v83 = vpop.permute.xlu0 %82
    %84 = vrot.lane.b32.xlu0 %v41, 124
    %v85 = vpop.permute.xlu0 %84
    %86 = vrot.lane.b32.xlu0 %v42, 124
    %v87 = vpop.permute.xlu0 %86
    %88 = vrot.lane.b32.xlu0 %v43, 124
    %v89 = vpop.permute.xlu0 %88
    %90 = vrot.lane.b32.xlu0 %v44, 124
    %v91 = vpop.permute.xlu0 %90
    %92 = vrot.lane.b32.xlu0 %v45, 124
    %v93 = vpop.permute.xlu0 %92
    %v110 = vmax.f32 %v30, %v63
    %v111 = vmax.f32 %v31, %v65
    %v112 = vmax.f32 %v32, %v67
    %v113 = vmax.f32 %v33, %v69
    %v114 = vmax.f32 %v34, %v71
    %v115 = vmax.f32 %v35, %v73
    %v116 = vmax.f32 %v36, %v75
    %v117 = vmax.f32 %v37, %v77
    %v118 = vmax.f32 %v38, %v79
    %v119 = vmax.f32 %v39, %v81
    %v120 = vmax.f32 %v40, %v83
    %v121 = vmax.f32 %v41, %v85
    %v122 = vmax.f32 %v42, %v87
    %v123 = vmax.f32 %v43, %v89
    %v124 = vmax.f32 %v44, %v91
    %v125 = vmax.f32 %v45, %v93
    %142 = vrot.lane.b32.xlu0 %v110, 120
    %v143 = vpop.permute.xlu0 %142
    %144 = vrot.lane.b32.xlu0 %v111, 120
    %v145 = vpop.permute.xlu0 %144
    %146 = vrot.lane.b32.xlu0 %v112, 120
    %v147 = vpop.permute.xlu0 %146
    %148 = vrot.lane.b32.xlu0 %v113, 120
    %v149 = vpop.permute.xlu0 %148
    %150 = vrot.lane.b32.xlu0 %v114, 120
    %v151 = vpop.permute.xlu0 %150
    %152 = vrot.lane.b32.xlu0 %v115, 120
    %v153 = vpop.permute.xlu0 %152
    %154 = vrot.lane.b32.xlu0 %v116, 120
    %v155 = vpop.permute.xlu0 %154
    %156 = vrot.lane.b32.xlu0 %v117, 120
    %v157 = vpop.permute.xlu0 %156
    %158 = vrot.lane.b32.xlu0 %v118, 120
    %v159 = vpop.permute.xlu0 %158
    %160 = vrot.lane.b32.xlu0 %v119, 120
    %v161 = vpop.permute.xlu0 %160
    %162 = vrot.lane.b32.xlu0 %v120, 120
    %v163 = vpop.permute.xlu0 %162
    %164 = vrot.lane.b32.xlu0 %v121, 120
    %v165 = vpop.permute.xlu0 %164
    %166 = vrot.lane.b32.xlu0 %v122, 120
    %v167 = vpop.permute.xlu0 %166
    %168 = vrot.lane.b32.xlu0 %v123, 120
    %v169 = vpop.permute.xlu0 %168
    %170 = vrot.lane.b32.xlu0 %v124, 120
    %v171 = vpop.permute.xlu0 %170
    %172 = vrot.lane.b32.xlu0 %v125, 120
    %v173 = vpop.permute.xlu0 %172
    %v190 = vmax.f32 %v110, %v143
    %v191 = vmax.f32 %v111, %v145
    %v192 = vmax.f32 %v112, %v147
    %v193 = vmax.f32 %v113, %v149
    %v194 = vmax.f32 %v114, %v151
    %v195 = vmax.f32 %v115, %v153
    %v196 = vmax.f32 %v116, %v155
    %v197 = vmax.f32 %v117, %v157
    %v198 = vmax.f32 %v118, %v159
    %v199 = vmax.f32 %v119, %v161
    %v200 = vmax.f32 %v120, %v163
    %v201 = vmax.f32 %v121, %v165
    %v202 = vmax.f32 %v122, %v167
    %v203 = vmax.f32 %v123, %v169
    %v204 = vmax.f32 %v124, %v171
    %v205 = vmax.f32 %v125, %v173
    %vm206 = vcmask 27648
    %207 = vst.msk [vmem:[#allocation2] sm:$0xf] %vm206, 0
    %vm208 = vcmask 24576
    %209 = vst.msk [vmem:[#allocation2 + $0x4] sm:$0x1] %vm208, 0
    %210 = vst.msk [vmem:[#allocation2 + $0x50] sm:$0xf] %vm206, 0
    %211 = vst.msk [vmem:[#allocation2 + $0x54] sm:$0x1] %vm208, 0
    %s212 = scalar_lea.vmem [#allocation2], 72
    %213 = vst.msk [vmem:[%s212] sm:$0xf] %vm206, 0
    %214 = vst.msk [vmem:[%s212 + $0x4] sm:$0x1] %vm208, 0
    %215 = vst.msk [vmem:[%s212 + $0x50] sm:$0xf] %vm206, 0
    %216 = vst.msk [vmem:[%s212 + $0x54] sm:$0x1] %vm208, 0
    %s217 = scalar_lea.vmem [#allocation2], 8
    %vm218 = vcmask 24576
    %vm219 = vsmask.f32 256
    %vm220 = vmand %vm218, %vm219
    %v221 = vld [vmem:[%s217] sm:$0x1]
    %v222 = vsel %vm220, 0, %v221
    %223 = vst [vmem:[%s217] sm:$0x1] %v222
    %v224 = vld [vmem:[%s217 + $0x8] sm:$0x1]
    %v225 = vsel %vm220, 0, %v224
    %226 = vst [vmem:[%s217 + $0x8] sm:$0x1] %v225
    %v227 = vld [vmem:[%s217 + $0x10] sm:$0x1]
    %v228 = vsel %vm220, 0, %v227
    %229 = vst [vmem:[%s217 + $0x10] sm:$0x1] %v228
    %v230 = vld [vmem:[%s217 + $0x18] sm:$0x1]
    %v231 = vsel %vm220, 0, %v230
    %232 = vst [vmem:[%s217 + $0x18] sm:$0x1] %v231
    %v233 = vld [vmem:[%s217 + $0x20] sm:$0x1]
    %v234 = vsel %vm220, 0, %v233
    %235 = vst [vmem:[%s217 + $0x20] sm:$0x1] %v234
    %v236 = vld [vmem:[%s217 + $0x28] sm:$0x1]
    %v237 = vsel %vm220, 0, %v236
    %238 = vst [vmem:[%s217 + $0x28] sm:$0x1] %v237
    %v239 = vld [vmem:[%s217 + $0x30] sm:$0x1]
    %v240 = vsel %vm220, 0, %v239
    %241 = vst [vmem:[%s217 + $0x30] sm:$0x1] %v240
    %v242 = vld [vmem:[%s217 + $0x38] sm:$0x1]
    %v243 = vsel %vm220, 0, %v242
    %244 = vst [vmem:[%s217 + $0x38] sm:$0x1] %v243
    %v245 = vld [vmem:[%s217 + $0x50] sm:$0x1]
    %v246 = vsel %vm220, 0, %v245
    %247 = vst [vmem:[%s217 + $0x50] sm:$0x1] %v246
    %v248 = vld [vmem:[%s217 + $0x58] sm:$0x1]
    %v249 = vsel %vm220, 0, %v248
    %250 = vst [vmem:[%s217 + $0x58] sm:$0x1] %v249
    %v251 = vld [vmem:[%s217 + $0x60] sm:$0x1]
    %v252 = vsel %vm220, 0, %v251
    %253 = vst [vmem:[%s217 + $0x60] sm:$0x1] %v252
    %v254 = vld [vmem:[%s217 + $0x68] sm:$0x1]
    %v255 = vsel %vm220, 0, %v254
    %256 = vst [vmem:[%s217 + $0x68] sm:$0x1] %v255
    %v257 = vld [vmem:[%s217 + $0x70] sm:$0x1]
    %v258 = vsel %vm220, 0, %v257
    %259 = vst [vmem:[%s217 + $0x70] sm:$0x1] %v258
    %v260 = vld [vmem:[%s217 + $0x78] sm:$0x1]
    %v261 = vsel %vm220, 0, %v260
    %262 = vst [vmem:[%s217 + $0x78] sm:$0x1] %v261
    %v263 = vld [vmem:[%s217 + $0x80] sm:$0x1]
    %v264 = vsel %vm220, 0, %v263
    %265 = vst [vmem:[%s217 + $0x80] sm:$0x1] %v264
    %v266 = vld [vmem:[%s217 + $0x88] sm:$0x1]
    %v267 = vsel %vm220, 0, %v266
    %268 = vst [vmem:[%s217 + $0x88] sm:$0x1] %v267
    %vm269 = vsmask.f32 7938
    %vm270 = vmand %vm218, %vm269
    %v271 = vld [vmem:[%s217 + $0x4] sm:$0x1]
    %v272 = vsel %vm270, 0, %v271
    %273 = vst [vmem:[%s217 + $0x4] sm:$0x1] %v272
    %v274 = vld [vmem:[%s217 + $0xc] sm:$0x1]
    %v275 = vsel %vm270, 0, %v274
    %276 = vst [vmem:[%s217 + $0xc] sm:$0x1] %v275
    %v277 = vld [vmem:[%s217 + $0x14] sm:$0x1]
    %v278 = vsel %vm270, 0, %v277
    %279 = vst [vmem:[%s217 + $0x14] sm:$0x1] %v278
    %v280 = vld [vmem:[%s217 + $0x1c] sm:$0x1]
    %v281 = vsel %vm270, 0, %v280
    %282 = vst [vmem:[%s217 + $0x1c] sm:$0x1] %v281
    %v283 = vld [vmem:[%s217 + $0x24] sm:$0x1]
    %v284 = vsel %vm270, 0, %v283
    %285 = vst [vmem:[%s217 + $0x24] sm:$0x1] %v284
    %v286 = vld [vmem:[%s217 + $0x2c] sm:$0x1]
    %v287 = vsel %vm270, 0, %v286
    %288 = vst [vmem:[%s217 + $0x2c] sm:$0x1] %v287
    %v289 = vld [vmem:[%s217 + $0x34] sm:$0x1]
    %v290 = vsel %vm270, 0, %v289
    %291 = vst [vmem:[%s217 + $0x34] sm:$0x1] %v290
    %v292 = vld [vmem:[%s217 + $0x3c] sm:$0x1]
    %v293 = vsel %vm270, 0, %v292
    %294 = vst [vmem:[%s217 + $0x3c] sm:$0x1] %v293
    %v295 = vld [vmem:[%s217 + $0x54] sm:$0x1]
    %v296 = vsel %vm270, 0, %v295
    %297 = vst [vmem:[%s217 + $0x54] sm:$0x1] %v296
    %v298 = vld [vmem:[%s217 + $0x5c] sm:$0x1]
    %v299 = vsel %vm270, 0, %v298
    %300 = vst [vmem:[%s217 + $0x5c] sm:$0x1] %v299
    %v301 = vld [vmem:[%s217 + $0x64] sm:$0x1]
    %v302 = vsel %vm270, 0, %v301
    %303 = vst [vmem:[%s217 + $0x64] sm:$0x1] %v302
    %v304 = vld [vmem:[%s217 + $0x6c] sm:$0x1]
    %v305 = vsel %vm270, 0, %v304
    %306 = vst [vmem:[%s217 + $0x6c] sm:$0x1] %v305
    %v307 = vld [vmem:[%s217 + $0x74] sm:$0x1]
    %v308 = vsel %vm270, 0, %v307
    %309 = vst [vmem:[%s217 + $0x74] sm:$0x1] %v308
    %v310 = vld [vmem:[%s217 + $0x7c] sm:$0x1]
    %v311 = vsel %vm270, 0, %v310
    %312 = vst [vmem:[%s217 + $0x7c] sm:$0x1] %v311
    %v313 = vld [vmem:[%s217 + $0x84] sm:$0x1]
    %v314 = vsel %vm270, 0, %v313
    %315 = vst [vmem:[%s217 + $0x84] sm:$0x1] %v314
    %v316 = vld [vmem:[%s217 + $0x8c] sm:$0x1]
    %v317 = vsel %vm270, 0, %v316
    %318 = vst [vmem:[%s217 + $0x8c] sm:$0x1] %v317
    %v319 = vpack.c.bf16 %v190, %v190
    %v320 = vpack.c.bf16 %v191, %v191
    %v321 = vpack.c.bf16 %v192, %v192
    %v322 = vpack.c.bf16 %v193, %v193
    %v323 = vpack.c.bf16 %v194, %v194
    %v324 = vpack.c.bf16 %v195, %v195
    %v325 = vpack.c.bf16 %v196, %v196
    %v326 = vpack.c.bf16 %v197, %v197
    %v327 = vpack.c.bf16 %v198, %v198
    %v328 = vpack.c.bf16 %v199, %v199
    %v329 = vpack.c.bf16 %v200, %v200
    %v330 = vpack.c.bf16 %v201, %v201
    %v331 = vpack.c.bf16 %v202, %v202
    %v332 = vpack.c.bf16 %v203, %v203
    %v333 = vpack.c.bf16 %v204, %v204
    %v334 = vpack.c.bf16 %v205, %v205
    %v351 = vunpack.c.l.b16 %v319
    %v352 = vunpack.c.l.b16 %v320
    %v353 = vunpack.c.l.b16 %v321
    %v354 = vunpack.c.l.b16 %v322
    %v355 = vunpack.c.l.b16 %v323
    %v356 = vunpack.c.l.b16 %v324
    %v357 = vunpack.c.l.b16 %v325
    %v358 = vunpack.c.l.b16 %v326
    %v359 = vunpack.c.l.b16 %v327
    %v360 = vunpack.c.l.b16 %v328
    %v361 = vunpack.c.l.b16 %v329
    %v362 = vunpack.c.l.b16 %v330
    %v363 = vunpack.c.l.b16 %v331
    %v364 = vunpack.c.l.b16 %v332
    %v365 = vunpack.c.l.b16 %v333
    %v366 = vunpack.c.l.b16 %v334
    %v367 = vpack.c.b16 %v351, %v351
    %v368 = vpack.c.b16 %v352, %v352
    %v369 = vpack.c.b16 %v353, %v353
    %v370 = vpack.c.b16 %v354, %v354
    %v371 = vpack.c.b16 %v355, %v355
    %v372 = vpack.c.b16 %v356, %v356
    %v373 = vpack.c.b16 %v357, %v357
    %v374 = vpack.c.b16 %v358, %v358
    %v375 = vpack.c.b16 %v359, %v359
    %v376 = vpack.c.b16 %v360, %v360
    %v377 = vpack.c.b16 %v361, %v361
    %v378 = vpack.c.b16 %v362, %v362
    %v379 = vpack.c.b16 %v363, %v363
    %v380 = vpack.c.b16 %v364, %v364
    %v381 = vpack.c.b16 %v365, %v365
    %v382 = vpack.c.b16 %v366, %v366
    %v384 = vshrl.u32 %v367, 16
    %v386 = vrot.slane %v384, 7
    %v387 = vshll.u32 %v367, 16
    %v389 = vor.u32 %v386, %v387
    %v390 = vrot.slane %v386, 4
    %v392 = vshrl.u32 %v368, 16
    %v394 = vrot.slane %v392, 7
    %v395 = vshll.u32 %v368, 16
    %v397 = vor.u32 %v394, %v395
    %v398 = vrot.slane %v394, 4
    %v400 = vshrl.u32 %v369, 16
    %v402 = vrot.slane %v400, 7
    %v403 = vshll.u32 %v369, 16
    %v405 = vor.u32 %v402, %v403
    %v406 = vrot.slane %v402, 4
    %v408 = vshrl.u32 %v370, 16
    %v410 = vrot.slane %v408, 7
    %v411 = vshll.u32 %v370, 16
    %v413 = vor.u32 %v410, %v411
    %v414 = vrot.slane %v410, 4
    %v416 = vshrl.u32 %v371, 16
    %v418 = vrot.slane %v416, 7
    %v419 = vshll.u32 %v371, 16
    %v421 = vor.u32 %v418, %v419
    %v422 = vrot.slane %v418, 4
    %v424 = vshrl.u32 %v372, 16
    %v426 = vrot.slane %v424, 7
    %v427 = vshll.u32 %v372, 16
    %v429 = vor.u32 %v426, %v427
    %v430 = vrot.slane %v426, 4
    %v432 = vshrl.u32 %v373, 16
    %v434 = vrot.slane %v432, 7
    %v435 = vshll.u32 %v373, 16
    %v437 = vor.u32 %v434, %v435
    %v438 = vrot.slane %v434, 4
    %v440 = vshrl.u32 %v374, 16
    %v442 = vrot.slane %v440, 7
    %v443 = vshll.u32 %v374, 16
    %v445 = vor.u32 %v442, %v443
    %v446 = vrot.slane %v442, 4
    %v448 = vshrl.u32 %v375, 16
    %v450 = vrot.slane %v448, 7
    %v451 = vshll.u32 %v375, 16
    %v453 = vor.u32 %v450, %v451
    %v454 = vrot.slane %v450, 4
    %v456 = vshrl.u32 %v376, 16
    %v458 = vrot.slane %v456, 7
    %v459 = vshll.u32 %v376, 16
    %v461 = vor.u32 %v458, %v459
    %v462 = vrot.slane %v458, 4
    %v464 = vshrl.u32 %v377, 16
    %v466 = vrot.slane %v464, 7
    %v467 = vshll.u32 %v377, 16
    %v469 = vor.u32 %v466, %v467
    %v470 = vrot.slane %v466, 4
    %v472 = vshrl.u32 %v378, 16
    %v474 = vrot.slane %v472, 7
    %v475 = vshll.u32 %v378, 16
    %v477 = vor.u32 %v474, %v475
    %v478 = vrot.slane %v474, 4
    %v480 = vshrl.u32 %v379, 16
    %v482 = vrot.slane %v480, 7
    %v483 = vshll.u32 %v379, 16
    %v485 = vor.u32 %v482, %v483
    %v486 = vrot.slane %v482, 4
    %v488 = vshrl.u32 %v380, 16
    %v490 = vrot.slane %v488, 7
    %v491 = vshll.u32 %v380, 16
    %v493 = vor.u32 %v490, %v491
    %v494 = vrot.slane %v490, 4
    %v496 = vshrl.u32 %v381, 16
    %v498 = vrot.slane %v496, 7
    %v499 = vshll.u32 %v381, 16
    %v501 = vor.u32 %v498, %v499
    %v502 = vrot.slane %v498, 4
    %v504 = vshrl.u32 %v382, 16
    %v506 = vrot.slane %v504, 7
    %v507 = vshll.u32 %v382, 16
    %v509 = vor.u32 %v506, %v507
    %v510 = vrot.slane %v506, 4
    %vm543 = vcmask 27648
    %vm544 = vmand %vm543, %vm269
    %v545 = vld [vmem:[%s217] sm:$0xf]
    %v546 = vsel %vm544, %v389, %v545
    %547 = vst [vmem:[%s217] sm:$0xf] %v546
    %v548 = vld [vmem:[%s217 + $0x4] sm:$0x1]
    %v549 = vsel %vm220, %v390, %v548
    %550 = vst [vmem:[%s217 + $0x4] sm:$0x1] %v549
    %v551 = vld [vmem:[%s217 + $0x8] sm:$0xf]
    %v552 = vsel %vm544, %v397, %v551
    %553 = vst [vmem:[%s217 + $0x8] sm:$0xf] %v552
    %v554 = vld [vmem:[%s217 + $0xc] sm:$0x1]
    %v555 = vsel %vm220, %v398, %v554
    %556 = vst [vmem:[%s217 + $0xc] sm:$0x1] %v555
    %v557 = vld [vmem:[%s217 + $0x10] sm:$0xf]
    %v558 = vsel %vm544, %v405, %v557
    %559 = vst [vmem:[%s217 + $0x10] sm:$0xf] %v558
    %v560 = vld [vmem:[%s217 + $0x14] sm:$0x1]
    %v561 = vsel %vm220, %v406, %v560
    %562 = vst [vmem:[%s217 + $0x14] sm:$0x1] %v561
    %v563 = vld [vmem:[%s217 + $0x18] sm:$0xf]
    %v564 = vsel %vm544, %v413, %v563
    %565 = vst [vmem:[%s217 + $0x18] sm:$0xf] %v564
    %v566 = vld [vmem:[%s217 + $0x1c] sm:$0x1]
    %v567 = vsel %vm220, %v414, %v566
    %568 = vst [vmem:[%s217 + $0x1c] sm:$0x1] %v567
    %v569 = vld [vmem:[%s217 + $0x20] sm:$0xf]
    %v570 = vsel %vm544, %v421, %v569
    %571 = vst [vmem:[%s217 + $0x20] sm:$0xf] %v570
    %v572 = vld [vmem:[%s217 + $0x24] sm:$0x1]
    %v573 = vsel %vm220, %v422, %v572
    %574 = vst [vmem:[%s217 + $0x24] sm:$0x1] %v573
    %v575 = vld [vmem:[%s217 + $0x28] sm:$0xf]
    %v576 = vsel %vm544, %v429, %v575
    %577 = vst [vmem:[%s217 + $0x28] sm:$0xf] %v576
    %v578 = vld [vmem:[%s217 + $0x2c] sm:$0x1]
    %v579 = vsel %vm220, %v430, %v578
    %580 = vst [vmem:[%s217 + $0x2c] sm:$0x1] %v579
    %v581 = vld [vmem:[%s217 + $0x30] sm:$0xf]
    %v582 = vsel %vm544, %v437, %v581
    %583 = vst [vmem:[%s217 + $0x30] sm:$0xf] %v582
    %v584 = vld [vmem:[%s217 + $0x34] sm:$0x1]
    %v585 = vsel %vm220, %v438, %v584
    %586 = vst [vmem:[%s217 + $0x34] sm:$0x1] %v585
    %v587 = vld [vmem:[%s217 + $0x38] sm:$0xf]
    %v588 = vsel %vm544, %v445, %v587
    %589 = vst [vmem:[%s217 + $0x38] sm:$0xf] %v588
    %v590 = vld [vmem:[%s217 + $0x3c] sm:$0x1]
    %v591 = vsel %vm220, %v446, %v590
    %592 = vst [vmem:[%s217 + $0x3c] sm:$0x1] %v591
    %v593 = vld [vmem:[%s217 + $0x50] sm:$0xf]
    %v594 = vsel %vm544, %v453, %v593
    %595 = vst [vmem:[%s217 + $0x50] sm:$0xf] %v594
    %v596 = vld [vmem:[%s217 + $0x54] sm:$0x1]
    %v597 = vsel %vm220, %v454, %v596
    %598 = vst [vmem:[%s217 + $0x54] sm:$0x1] %v597
    %v599 = vld [vmem:[%s217 + $0x58] sm:$0xf]
    %v600 = vsel %vm544, %v461, %v599
    %601 = vst [vmem:[%s217 + $0x58] sm:$0xf] %v600
    %v602 = vld [vmem:[%s217 + $0x5c] sm:$0x1]
    %v603 = vsel %vm220, %v462, %v602
    %604 = vst [vmem:[%s217 + $0x5c] sm:$0x1] %v603
    %v605 = vld [vmem:[%s217 + $0x60] sm:$0xf]
    %v606 = vsel %vm544, %v469, %v605
    %607 = vst [vmem:[%s217 + $0x60] sm:$0xf] %v606
    %v608 = vld [vmem:[%s217 + $0x64] sm:$0x1]
    %v609 = vsel %vm220, %v470, %v608
    %610 = vst [vmem:[%s217 + $0x64] sm:$0x1] %v609
    %v611 = vld [vmem:[%s217 + $0x68] sm:$0xf]
    %v612 = vsel %vm544, %v477, %v611
    %613 = vst [vmem:[%s217 + $0x68] sm:$0xf] %v612
    %v614 = vld [vmem:[%s217 + $0x6c] sm:$0x1]
    %v615 = vsel %vm220, %v478, %v614
    %616 = vst [vmem:[%s217 + $0x6c] sm:$0x1] %v615
    %v617 = vld [vmem:[%s217 + $0x70] sm:$0xf]
    %v618 = vsel %vm544, %v485, %v617
    %619 = vst [vmem:[%s217 + $0x70] sm:$0xf] %v618
    %v620 = vld [vmem:[%s217 + $0x74] sm:$0x1]
    %v621 = vsel %vm220, %v486, %v620
    %622 = vst [vmem:[%s217 + $0x74] sm:$0x1] %v621
    %v623 = vld [vmem:[%s217 + $0x78] sm:$0xf]
    %v624 = vsel %vm544, %v493, %v623
    %625 = vst [vmem:[%s217 + $0x78] sm:$0xf] %v624
    %v626 = vld [vmem:[%s217 + $0x7c] sm:$0x1]
    %v627 = vsel %vm220, %v494, %v626
    %628 = vst [vmem:[%s217 + $0x7c] sm:$0x1] %v627
    %v629 = vld [vmem:[%s217 + $0x80] sm:$0xf]
    %v630 = vsel %vm544, %v501, %v629
    %631 = vst [vmem:[%s217 + $0x80] sm:$0xf] %v630
    %v632 = vld [vmem:[%s217 + $0x84] sm:$0x1]
    %v633 = vsel %vm220, %v502, %v632
    %634 = vst [vmem:[%s217 + $0x84] sm:$0x1] %v633
    %v635 = vld [vmem:[%s217 + $0x88] sm:$0xf]
    %v636 = vsel %vm544, %v509, %v635
    %637 = vst [vmem:[%s217 + $0x88] sm:$0xf] %v636
    %v638 = vld [vmem:[%s217 + $0x8c] sm:$0x1]
    %v639 = vsel %vm220, %v510, %v638
    %640 = vst [vmem:[%s217 + $0x8c] sm:$0x1] %v639
    %v641 = vld [vmem:[#allocation2] sm:$0xf]
    %v642 = vld [vmem:[#allocation2 + $0x8] sm:$0xf]
    %v643 = vld [vmem:[#allocation2 + $0x10] sm:$0xf]
    %v644 = vld [vmem:[#allocation2 + $0x18] sm:$0xf]
    %v645 = vld [vmem:[#allocation2 + $0x20] sm:$0xf]
    %v646 = vld [vmem:[#allocation2 + $0x28] sm:$0xf]
    %v647 = vld [vmem:[#allocation2 + $0x30] sm:$0xf]
    %v648 = vld [vmem:[#allocation2 + $0x38] sm:$0xf]
    %v649 = vld [vmem:[#allocation2 + $0x50] sm:$0xf]
    %v650 = vld [vmem:[#allocation2 + $0x58] sm:$0xf]
    %v651 = vld [vmem:[#allocation2 + $0x60] sm:$0xf]
    %v652 = vld [vmem:[#allocation2 + $0x68] sm:$0xf]
    %v653 = vld [vmem:[#allocation2 + $0x70] sm:$0xf]
    %v654 = vld [vmem:[#allocation2 + $0x78] sm:$0xf]
    %v655 = vld [vmem:[#allocation2 + $0x80] sm:$0xf]
    %v656 = vld [vmem:[#allocation2 + $0x88] sm:$0xf]
    %657 = vst.msk [vmem:[#allocation3] sm:$0xf] %vm206, %v641
    %658 = vst.msk [vmem:[#allocation3 + $0x4] sm:$0xf] %vm206, %v642
    %659 = vst.msk [vmem:[#allocation3 + $0x8] sm:$0xf] %vm206, %v643
    %660 = vst.msk [vmem:[#allocation3 + $0xc] sm:$0xf] %vm206, %v644
    %661 = vst.msk [vmem:[#allocation3 + $0x10] sm:$0xf] %vm206, %v645
    %662 = vst.msk [vmem:[#allocation3 + $0x14] sm:$0xf] %vm206, %v646
    %663 = vst.msk [vmem:[#allocation3 + $0x18] sm:$0xf] %vm206, %v647
    %664 = vst.msk [vmem:[#allocation3 + $0x1c] sm:$0xf] %vm206, %v648
    %665 = vst.msk [vmem:[#allocation3 + $0x20] sm:$0xf] %vm206, %v649
    %666 = vst.msk [vmem:[#allocation3 + $0x24] sm:$0xf] %vm206, %v650
    %667 = vst.msk [vmem:[#allocation3 + $0x28] sm:$0xf] %vm206, %v651
    %668 = vst.msk [vmem:[#allocation3 + $0x2c] sm:$0xf] %vm206, %v652
    %669 = vst.msk [vmem:[#allocation3 + $0x30] sm:$0xf] %vm206, %v653
    %670 = vst.msk [vmem:[#allocation3 + $0x34] sm:$0xf] %vm206, %v654
    %671 = vst.msk [vmem:[#allocation3 + $0x38] sm:$0xf] %vm206, %v655
    %672 = vst.msk [vmem:[#allocation3 + $0x3c] sm:$0xf] %vm206, %v656
    %v673 = vld [vmem:[#allocation2] sm:$0xf]
    %v674 = vld [vmem:[#allocation2 + $0x4] sm:$0x1]
    %v675 = vld [vmem:[#allocation2 + $0x8] sm:$0xf]
    %v676 = vld [vmem:[#allocation2 + $0xc] sm:$0x1]
    %v677 = vld [vmem:[#allocation2 + $0x10] sm:$0xf]
    %v678 = vld [vmem:[#allocation2 + $0x14] sm:$0x1]
    %v679 = vld [vmem:[#allocation2 + $0x18] sm:$0xf]
    %v680 = vld [vmem:[#allocation2 + $0x1c] sm:$0x1]
    %v681 = vld [vmem:[#allocation2 + $0x20] sm:$0xf]
    %v682 = vld [vmem:[#allocation2 + $0x24] sm:$0x1]
    %v683 = vld [vmem:[#allocation2 + $0x28] sm:$0xf]
    %v684 = vld [vmem:[#allocation2 + $0x2c] sm:$0x1]
    %v685 = vld [vmem:[#allocation2 + $0x30] sm:$0xf]
    %v686 = vld [vmem:[#allocation2 + $0x34] sm:$0x1]
    %v687 = vld [vmem:[#allocation2 + $0x38] sm:$0xf]
    %v688 = vld [vmem:[#allocation2 + $0x3c] sm:$0x1]
    %v689 = vld [vmem:[#allocation2 + $0x50] sm:$0xf]
    %v690 = vld [vmem:[#allocation2 + $0x54] sm:$0x1]
    %v691 = vld [vmem:[#allocation2 + $0x58] sm:$0xf]
    %v692 = vld [vmem:[#allocation2 + $0x5c] sm:$0x1]
    %v693 = vld [vmem:[#allocation2 + $0x60] sm:$0xf]
    %v694 = vld [vmem:[#allocation2 + $0x64] sm:$0x1]
    %v695 = vld [vmem:[#allocation2 + $0x68] sm:$0xf]
    %v696 = vld [vmem:[#allocation2 + $0x6c] sm:$0x1]
    %v697 = vld [vmem:[#allocation2 + $0x70] sm:$0xf]
    %v698 = vld [vmem:[#allocation2 + $0x74] sm:$0x1]
    %v699 = vld [vmem:[#allocation2 + $0x78] sm:$0xf]
    %v700 = vld [vmem:[#allocation2 + $0x7c] sm:$0x1]
    %v701 = vld [vmem:[#allocation2 + $0x80] sm:$0xf]
    %v702 = vld [vmem:[#allocation2 + $0x84] sm:$0x1]
    %v703 = vld [vmem:[#allocation2 + $0x88] sm:$0xf]
    %v704 = vld [vmem:[#allocation2 + $0x8c] sm:$0x1]
    %vm705 = vsmask.f32 3328
    %vm706 = vsmask.f32 7440
    %vm707 = vmor %vm705, %vm706
    %v709 = vshrl.u32 %v673, 16
    %v711 = vrot.slane %v709, 4
    %v712 = vshll.u32 %v673, 16
    %v714 = vrot.slane %v712, 5
    %v715 = vor.u32 %v711, %v714
    %v716 = vrot.slane %v715, 4
    %v718 = vshll.u32 %v674, 16
    %v720 = vrot.slane %v718, 5
    %v721 = vsel %vm707, %v716, %v720
    %v723 = vshrl.u32 %v675, 16
    %v725 = vrot.slane %v723, 4
    %v726 = vshll.u32 %v675, 16
    %v728 = vrot.slane %v726, 5
    %v729 = vor.u32 %v725, %v728
    %v730 = vrot.slane %v729, 4
    %v732 = vshll.u32 %v676, 16
    %v734 = vrot.slane %v732, 5
    %v735 = vsel %vm707, %v730, %v734
    %v737 = vshrl.u32 %v677, 16
    %v739 = vrot.slane %v737, 4
    %v740 = vshll.u32 %v677, 16
    %v742 = vrot.slane %v740, 5
    %v743 = vor.u32 %v739, %v742
    %v744 = vrot.slane %v743, 4
    %v746 = vshll.u32 %v678, 16
    %v748 = vrot.slane %v746, 5
    %v749 = vsel %vm707, %v744, %v748
    %v751 = vshrl.u32 %v679, 16
    %v753 = vrot.slane %v751, 4
    %v754 = vshll.u32 %v679, 16
    %v756 = vrot.slane %v754, 5
    %v757 = vor.u32 %v753, %v756
    %v758 = vrot.slane %v757, 4
    %v760 = vshll.u32 %v680, 16
    %v762 = vrot.slane %v760, 5
    %v763 = vsel %vm707, %v758, %v762
    %v765 = vshrl.u32 %v681, 16
    %v767 = vrot.slane %v765, 4
    %v768 = vshll.u32 %v681, 16
    %v770 = vrot.slane %v768, 5
    %v771 = vor.u32 %v767, %v770
    %v772 = vrot.slane %v771, 4
    %v774 = vshll.u32 %v682, 16
    %v776 = vrot.slane %v774, 5
    %v777 = vsel %vm707, %v772, %v776
    %v779 = vshrl.u32 %v683, 16
    %v781 = vrot.slane %v779, 4
    %v782 = vshll.u32 %v683, 16
    %v784 = vrot.slane %v782, 5
    %v785 = vor.u32 %v781, %v784
    %v786 = vrot.slane %v785, 4
    %v788 = vshll.u32 %v684, 16
    %v790 = vrot.slane %v788, 5
    %v791 = vsel %vm707, %v786, %v790
    %v793 = vshrl.u32 %v685, 16
    %v795 = vrot.slane %v793, 4
    %v796 = vshll.u32 %v685, 16
    %v798 = vrot.slane %v796, 5
    %v799 = vor.u32 %v795, %v798
    %v800 = vrot.slane %v799, 4
    %v802 = vshll.u32 %v686, 16
    %v804 = vrot.slane %v802, 5
    %v805 = vsel %vm707, %v800, %v804
    %v807 = vshrl.u32 %v687, 16
    %v809 = vrot.slane %v807, 4
    %v810 = vshll.u32 %v687, 16
    %v812 = vrot.slane %v810, 5
    %v813 = vor.u32 %v809, %v812
    %v814 = vrot.slane %v813, 4
    %v816 = vshll.u32 %v688, 16
    %v818 = vrot.slane %v816, 5
    %v819 = vsel %vm707, %v814, %v818
    %v821 = vshrl.u32 %v689, 16
    %v823 = vrot.slane %v821, 4
    %v824 = vshll.u32 %v689, 16
    %v826 = vrot.slane %v824, 5
    %v827 = vor.u32 %v823, %v826
    %v828 = vrot.slane %v827, 4
    %v830 = vshll.u32 %v690, 16
    %v832 = vrot.slane %v830, 5
    %v833 = vsel %vm707, %v828, %v832
    %v835 = vshrl.u32 %v691, 16
    %v837 = vrot.slane %v835, 4
    %v838 = vshll.u32 %v691, 16
    %v840 = vrot.slane %v838, 5
    %v841 = vor.u32 %v837, %v840
    %v842 = vrot.slane %v841, 4
    %v844 = vshll.u32 %v692, 16
    %v846 = vrot.slane %v844, 5
    %v847 = vsel %vm707, %v842, %v846
    %v849 = vshrl.u32 %v693, 16
    %v851 = vrot.slane %v849, 4
    %v852 = vshll.u32 %v693, 16
    %v854 = vrot.slane %v852, 5
    %v855 = vor.u32 %v851, %v854
    %v856 = vrot.slane %v855, 4
    %v858 = vshll.u32 %v694, 16
    %v860 = vrot.slane %v858, 5
    %v861 = vsel %vm707, %v856, %v860
    %v863 = vshrl.u32 %v695, 16
    %v865 = vrot.slane %v863, 4
    %v866 = vshll.u32 %v695, 16
    %v868 = vrot.slane %v866, 5
    %v869 = vor.u32 %v865, %v868
    %v870 = vrot.slane %v869, 4
    %v872 = vshll.u32 %v696, 16
    %v874 = vrot.slane %v872, 5
    %v875 = vsel %vm707, %v870, %v874
    %v877 = vshrl.u32 %v697, 16
    %v879 = vrot.slane %v877, 4
    %v880 = vshll.u32 %v697, 16
    %v882 = vrot.slane %v880, 5
    %v883 = vor.u32 %v879, %v882
    %v884 = vrot.slane %v883, 4
    %v886 = vshll.u32 %v698, 16
    %v888 = vrot.slane %v886, 5
    %v889 = vsel %vm707, %v884, %v888
    %v891 = vshrl.u32 %v699, 16
    %v893 = vrot.slane %v891, 4
    %v894 = vshll.u32 %v699, 16
    %v896 = vrot.slane %v894, 5
    %v897 = vor.u32 %v893, %v896
    %v898 = vrot.slane %v897, 4
    %v900 = vshll.u32 %v700, 16
    %v902 = vrot.slane %v900, 5
    %v903 = vsel %vm707, %v898, %v902
    %v905 = vshrl.u32 %v701, 16
    %v907 = vrot.slane %v905, 4
    %v908 = vshll.u32 %v701, 16
    %v910 = vrot.slane %v908, 5
    %v911 = vor.u32 %v907, %v910
    %v912 = vrot.slane %v911, 4
    %v914 = vshll.u32 %v702, 16
    %v916 = vrot.slane %v914, 5
    %v917 = vsel %vm707, %v912, %v916
    %v919 = vshrl.u32 %v703, 16
    %v921 = vrot.slane %v919, 4
    %v922 = vshll.u32 %v703, 16
    %v924 = vrot.slane %v922, 5
    %v925 = vor.u32 %v921, %v924
    %v926 = vrot.slane %v925, 4
    %v928 = vshll.u32 %v704, 16
    %v930 = vrot.slane %v928, 5
    %v931 = vsel %vm707, %v926, %v930
    %932 = vrot.lane.b32.xlu0 %v721, 4
    %v933 = vpop.permute.xlu0 %932
    %934 = vrot.lane.b32.xlu0 %v735, 4
    %v935 = vpop.permute.xlu0 %934
    %936 = vrot.lane.b32.xlu0 %v749, 4
    %v937 = vpop.permute.xlu0 %936
    %938 = vrot.lane.b32.xlu0 %v763, 4
    %v939 = vpop.permute.xlu0 %938
    %940 = vrot.lane.b32.xlu0 %v777, 4
    %v941 = vpop.permute.xlu0 %940
    %942 = vrot.lane.b32.xlu0 %v791, 4
    %v943 = vpop.permute.xlu0 %942
    %944 = vrot.lane.b32.xlu0 %v805, 4
    %v945 = vpop.permute.xlu0 %944
    %946 = vrot.lane.b32.xlu0 %v819, 4
    %v947 = vpop.permute.xlu0 %946
    %948 = vrot.lane.b32.xlu0 %v833, 4
    %v949 = vpop.permute.xlu0 %948
    %950 = vrot.lane.b32.xlu0 %v847, 4
    %v951 = vpop.permute.xlu0 %950
    %952 = vrot.lane.b32.xlu0 %v861, 4
    %v953 = vpop.permute.xlu0 %952
    %954 = vrot.lane.b32.xlu0 %v875, 4
    %v955 = vpop.permute.xlu0 %954
    %956 = vrot.lane.b32.xlu0 %v889, 4
    %v957 = vpop.permute.xlu0 %956
    %958 = vrot.lane.b32.xlu0 %v903, 4
    %v959 = vpop.permute.xlu0 %958
    %960 = vrot.lane.b32.xlu0 %v917, 4
    %v961 = vpop.permute.xlu0 %960
    %962 = vrot.lane.b32.xlu0 %v931, 4
    %v963 = vpop.permute.xlu0 %962
    %vm980 = vcmask 60448
    %981 = vst.msk [vmem:[#allocation3] sm:$0xf] %vm980, %v933
    %982 = vst.msk [vmem:[#allocation3 + $0x4] sm:$0xf] %vm980, %v935
    %983 = vst.msk [vmem:[#allocation3 + $0x8] sm:$0xf] %vm980, %v937
    %984 = vst.msk [vmem:[#allocation3 + $0xc] sm:$0xf] %vm980, %v939
    %985 = vst.msk [vmem:[#allocation3 + $0x10] sm:$0xf] %vm980, %v941
    %986 = vst.msk [vmem:[#allocation3 + $0x14] sm:$0xf] %vm980, %v943
    %987 = vst.msk [vmem:[#allocation3 + $0x18] sm:$0xf] %vm980, %v945
    %988 = vst.msk [vmem:[#allocation3 + $0x1c] sm:$0xf] %vm980, %v947
    %989 = vst.msk [vmem:[#allocation3 + $0x20] sm:$0xf] %vm980, %v949
    %990 = vst.msk [vmem:[#allocation3 + $0x24] sm:$0xf] %vm980, %v951
    %991 = vst.msk [vmem:[#allocation3 + $0x28] sm:$0xf] %vm980, %v953
    %992 = vst.msk [vmem:[#allocation3 + $0x2c] sm:$0xf] %vm980, %v955
    %993 = vst.msk [vmem:[#allocation3 + $0x30] sm:$0xf] %vm980, %v957
    %994 = vst.msk [vmem:[#allocation3 + $0x34] sm:$0xf] %vm980, %v959
    %995 = vst.msk [vmem:[#allocation3 + $0x38] sm:$0xf] %vm980, %v961
    %996 = vst.msk [vmem:[#allocation3 + $0x3c] sm:$0xf] %vm980, %v963
    %v997 = vld [vmem:[#allocation2] sm:$0xe]
    %v998 = vld [vmem:[#allocation2 + $0x4] sm:$0x1]
    %v999 = vld [vmem:[#allocation2 + $0x8] sm:$0xe]
    %v1000 = vld [vmem:[#allocation2 + $0xc] sm:$0x1]
    %v1001 = vld [vmem:[#allocation2 + $0x10] sm:$0xe]
    %v1002 = vld [vmem:[#allocation2 + $0x14] sm:$0x1]
    %v1003 = vld [vmem:[#allocation2 + $0x18] sm:$0xe]
    %v1004 = vld [vmem:[#allocation2 + $0x1c] sm:$0x1]
    %v1005 = vld [vmem:[#allocation2 + $0x20] sm:$0xe]
    %v1006 = vld [vmem:[#allocation2 + $0x24] sm:$0x1]
    %v1007 = vld [vmem:[#allocation2 + $0x28] sm:$0xe]
    %v1008 = vld [vmem:[#allocation2 + $0x2c] sm:$0x1]
    %v1009 = vld [vmem:[#allocation2 + $0x30] sm:$0xe]
    %v1010 = vld [vmem:[#allocation2 + $0x34] sm:$0x1]
    %v1011 = vld [vmem:[#allocation2 + $0x38] sm:$0xe]
    %v1012 = vld [vmem:[#allocation2 + $0x3c] sm:$0x1]
    %v1013 = vld [vmem:[#allocation2 + $0x50] sm:$0xe]
    %v1014 = vld [vmem:[#allocation2 + $0x54] sm:$0x1]
    %v1015 = vld [vmem:[#allocation2 + $0x58] sm:$0xe]
    %v1016 = vld [vmem:[#allocation2 + $0x5c] sm:$0x1]
    %v1017 = vld [vmem:[#allocation2 + $0x60] sm:$0xe]
    %v1018 = vld [vmem:[#allocation2 + $0x64] sm:$0x1]
    %v1019 = vld [vmem:[#allocation2 + $0x68] sm:$0xe]
    %v1020 = vld [vmem:[#allocation2 + $0x6c] sm:$0x1]
    %v1021 = vld [vmem:[#allocation2 + $0x70] sm:$0xe]
    %v1022 = vld [vmem:[#allocation2 + $0x74] sm:$0x1]
    %v1023 = vld [vmem:[#allocation2 + $0x78] sm:$0xe]
    %v1024 = vld [vmem:[#allocation2 + $0x7c] sm:$0x1]
    %v1025 = vld [vmem:[#allocation2 + $0x80] sm:$0xe]
    %v1026 = vld [vmem:[#allocation2 + $0x84] sm:$0x1]
    %v1027 = vld [vmem:[#allocation2 + $0x88] sm:$0xe]
    %v1028 = vld [vmem:[#allocation2 + $0x8c] sm:$0x1]
    %vm1061 = vcmask 1042432
    %vm1062 = vcmask 1046532
    %vm1063 = vmor %vm1061, %vm1062
    %v1064 = vrot.slane %v997, 5
    %v1065 = vrot.slane %v1064, 4
    %v1066 = vrot.slane %v998, 5
    %v1067 = vsel %vm1063, %v1065, %v1066
    %v1068 = vrot.slane %v999, 5
    %v1069 = vrot.slane %v1068, 4
    %v1070 = vrot.slane %v1000, 5
    %v1071 = vsel %vm1063, %v1069, %v1070
    %v1072 = vrot.slane %v1001, 5
    %v1073 = vrot.slane %v1072, 4
    %v1074 = vrot.slane %v1002, 5
    %v1075 = vsel %vm1063, %v1073, %v1074
    %v1076 = vrot.slane %v1003, 5
    %v1077 = vrot.slane %v1076, 4
    %v1078 = vrot.slane %v1004, 5
    %v1079 = vsel %vm1063, %v1077, %v1078
    %v1080 = vrot.slane %v1005, 5
    %v1081 = vrot.slane %v1080, 4
    %v1082 = vrot.slane %v1006, 5
    %v1083 = vsel %vm1063, %v1081, %v1082
    %v1084 = vrot.slane %v1007, 5
    %v1085 = vrot.slane %v1084, 4
    %v1086 = vrot.slane %v1008, 5
    %v1087 = vsel %vm1063, %v1085, %v1086
    %v1088 = vrot.slane %v1009, 5
    %v1089 = vrot.slane %v1088, 4
    %v1090 = vrot.slane %v1010, 5
    %v1091 = vsel %vm1063, %v1089, %v1090
    %v1092 = vrot.slane %v1011, 5
    %v1093 = vrot.slane %v1092, 4
    %v1094 = vrot.slane %v1012, 5
    %v1095 = vsel %vm1063, %v1093, %v1094
    %v1096 = vrot.slane %v1013, 5
    %v1097 = vrot.slane %v1096, 4
    %v1098 = vrot.slane %v1014, 5
    %v1099 = vsel %vm1063, %v1097, %v1098
    %v1100 = vrot.slane %v1015, 5
    %v1101 = vrot.slane %v1100, 4
    %v1102 = vrot.slane %v1016, 5
    %v1103 = vsel %vm1063, %v1101, %v1102
    %v1104 = vrot.slane %v1017, 5
    %v1105 = vrot.slane %v1104, 4
    %v1106 = vrot.slane %v1018, 5
    %v1107 = vsel %vm1063, %v1105, %v1106
    %v1108 = vrot.slane %v1019, 5
    %v1109 = vrot.slane %v1108, 4
    %v1110 = vrot.slane %v1020, 5
    %v1111 = vsel %vm1063, %v1109, %v1110
    %v1112 = vrot.slane %v1021, 5
    %v1113 = vrot.slane %v1112, 4
    %v1114 = vrot.slane %v1022, 5
    %v1115 = vsel %vm1063, %v1113, %v1114
    %v1116 = vrot.slane %v1023, 5
    %v1117 = vrot.slane %v1116, 4
    %v1118 = vrot.slane %v1024, 5
    %v1119 = vsel %vm1063, %v1117, %v1118
    %v1120 = vrot.slane %v1025, 5
    %v1121 = vrot.slane %v1120, 4
    %v1122 = vrot.slane %v1026, 5
    %v1123 = vsel %vm1063, %v1121, %v1122
    %v1124 = vrot.slane %v1027, 5
    %v1125 = vrot.slane %v1124, 4
    %v1126 = vrot.slane %v1028, 5
    %v1127 = vsel %vm1063, %v1125, %v1126
    %1128 = vrot.lane.b32.xlu0 %v1067, 8
    %v1129 = vpop.permute.xlu0 %1128
    %1130 = vrot.lane.b32.xlu0 %v1071, 8
    %v1131 = vpop.permute.xlu0 %1130
    %1132 = vrot.lane.b32.xlu0 %v1075, 8
    %v1133 = vpop.permute.xlu0 %1132
    %1134 = vrot.lane.b32.xlu0 %v1079, 8
    %v1135 = vpop.permute.xlu0 %1134
    %1136 = vrot.lane.b32.xlu0 %v1083, 8
    %v1137 = vpop.permute.xlu0 %1136
    %1138 = vrot.lane.b32.xlu0 %v1087, 8
    %v1139 = vpop.permute.xlu0 %1138
    %1140 = vrot.lane.b32.xlu0 %v1091, 8
    %v1141 = vpop.permute.xlu0 %1140
    %1142 = vrot.lane.b32.xlu0 %v1095, 8
    %v1143 = vpop.permute.xlu0 %1142
    %1144 = vrot.lane.b32.xlu0 %v1099, 8
    %v1145 = vpop.permute.xlu0 %1144
    %1146 = vrot.lane.b32.xlu0 %v1103, 8
    %v1147 = vpop.permute.xlu0 %1146
    %1148 = vrot.lane.b32.xlu0 %v1107, 8
    %v1149 = vpop.permute.xlu0 %1148
    %1150 = vrot.lane.b32.xlu0 %v1111, 8
    %v1151 = vpop.permute.xlu0 %1150
    %1152 = vrot.lane.b32.xlu0 %v1115, 8
    %v1153 = vpop.permute.xlu0 %1152
    %1154 = vrot.lane.b32.xlu0 %v1119, 8
    %v1155 = vpop.permute.xlu0 %1154
    %1156 = vrot.lane.b32.xlu0 %v1123, 8
    %v1157 = vpop.permute.xlu0 %1156
    %1158 = vrot.lane.b32.xlu0 %v1127, 8
    %v1159 = vpop.permute.xlu0 %1158
    %vm1176 = vcmask 93248
    %1177 = vst.msk [vmem:[#allocation3] sm:$0xf] %vm1176, %v1129
    %1178 = vst.msk [vmem:[#allocation3 + $0x4] sm:$0xf] %vm1176, %v1131
    %1179 = vst.msk [vmem:[#allocation3 + $0x8] sm:$0xf] %vm1176, %v1133
    %1180 = vst.msk [vmem:[#allocation3 + $0xc] sm:$0xf] %vm1176, %v1135
    %1181 = vst.msk [vmem:[#allocation3 + $0x10] sm:$0xf] %vm1176, %v1137
    %1182 = vst.msk [vmem:[#allocation3 + $0x14] sm:$0xf] %vm1176, %v1139
    %1183 = vst.msk [vmem:[#allocation3 + $0x18] sm:$0xf] %vm1176, %v1141
    %1184 = vst.msk [vmem:[#allocation3 + $0x1c] sm:$0xf] %vm1176, %v1143
    %1185 = vst.msk [vmem:[#allocation3 + $0x20] sm:$0xf] %vm1176, %v1145
    %1186 = vst.msk [vmem:[#allocation3 + $0x24] sm:$0xf] %vm1176, %v1147
    %1187 = vst.msk [vmem:[#allocation3 + $0x28] sm:$0xf] %vm1176, %v1149
    %1188 = vst.msk [vmem:[#allocation3 + $0x2c] sm:$0xf] %vm1176, %v1151
    %1189 = vst.msk [vmem:[#allocation3 + $0x30] sm:$0xf] %vm1176, %v1153
    %1190 = vst.msk [vmem:[#allocation3 + $0x34] sm:$0xf] %vm1176, %v1155
    %1191 = vst.msk [vmem:[#allocation3 + $0x38] sm:$0xf] %vm1176, %v1157
    %1192 = vst.msk [vmem:[#allocation3 + $0x3c] sm:$0xf] %vm1176, %v1159
    %v1193 = vld [vmem:[%s217] sm:$0xf]
    %v1194 = vld [vmem:[%s217 + $0x8] sm:$0xf]
    %v1195 = vld [vmem:[%s217 + $0x10] sm:$0xf]
    %v1196 = vld [vmem:[%s217 + $0x18] sm:$0xf]
    %v1197 = vld [vmem:[%s217 + $0x20] sm:$0xf]
    %v1198 = vld [vmem:[%s217 + $0x28] sm:$0xf]
    %v1199 = vld [vmem:[%s217 + $0x30] sm:$0xf]
    %v1200 = vld [vmem:[%s217 + $0x38] sm:$0xf]
    %v1201 = vld [vmem:[%s217 + $0x50] sm:$0xf]
    %v1202 = vld [vmem:[%s217 + $0x58] sm:$0xf]
    %v1203 = vld [vmem:[%s217 + $0x60] sm:$0xf]
    %v1204 = vld [vmem:[%s217 + $0x68] sm:$0xf]
    %v1205 = vld [vmem:[%s217 + $0x70] sm:$0xf]
    %v1206 = vld [vmem:[%s217 + $0x78] sm:$0xf]
    %v1207 = vld [vmem:[%s217 + $0x80] sm:$0xf]
    %v1208 = vld [vmem:[%s217 + $0x88] sm:$0xf]
    %1225 = vrot.lane.b32.xlu0 %v1193, 12
    %v1226 = vpop.permute.xlu0 %1225
    %1227 = vrot.lane.b32.xlu0 %v1194, 12
    %v1228 = vpop.permute.xlu0 %1227
    %1229 = vrot.lane.b32.xlu0 %v1195, 12
    %v1230 = vpop.permute.xlu0 %1229
    %1231 = vrot.lane.b32.xlu0 %v1196, 12
    %v1232 = vpop.permute.xlu0 %1231
    %1233 = vrot.lane.b32.xlu0 %v1197, 12
    %v1234 = vpop.permute.xlu0 %1233
    %1235 = vrot.lane.b32.xlu0 %v1198, 12
    %v1236 = vpop.permute.xlu0 %1235
    %1237 = vrot.lane.b32.xlu0 %v1199, 12
    %v1238 = vpop.permute.xlu0 %1237
    %1239 = vrot.lane.b32.xlu0 %v1200, 12
    %v1240 = vpop.permute.xlu0 %1239
    %1241 = vrot.lane.b32.xlu0 %v1201, 12
    %v1242 = vpop.permute.xlu0 %1241
    %1243 = vrot.lane.b32.xlu0 %v1202, 12
    %v1244 = vpop.permute.xlu0 %1243
    %1245 = vrot.lane.b32.xlu0 %v1203, 12
    %v1246 = vpop.permute.xlu0 %1245
    %1247 = vrot.lane.b32.xlu0 %v1204, 12
    %v1248 = vpop.permute.xlu0 %1247
    %1249 = vrot.lane.b32.xlu0 %v1205, 12
    %v1250 = vpop.permute.xlu0 %1249
    %1251 = vrot.lane.b32.xlu0 %v1206, 12
    %v1252 = vpop.permute.xlu0 %1251
    %1253 = vrot.lane.b32.xlu0 %v1207, 12
    %v1254 = vpop.permute.xlu0 %1253
    %1255 = vrot.lane.b32.xlu0 %v1208, 12
    %v1256 = vpop.permute.xlu0 %1255
    %vm1273 = vcmask 126048
    %1274 = vst.msk [vmem:[#allocation3] sm:$0xf] %vm1273, %v1226
    %1275 = vst.msk [vmem:[#allocation3 + $0x4] sm:$0xf] %vm1273, %v1228
    %1276 = vst.msk [vmem:[#allocation3 + $0x8] sm:$0xf] %vm1273, %v1230
    %1277 = vst.msk [vmem:[#allocation3 + $0xc] sm:$0xf] %vm1273, %v1232
    %1278 = vst.msk [vmem:[#allocation3 + $0x10] sm:$0xf] %vm1273, %v1234
    %1279 = vst.msk [vmem:[#allocation3 + $0x14] sm:$0xf] %vm1273, %v1236
    %1280 = vst.msk [vmem:[#allocation3 + $0x18] sm:$0xf] %vm1273, %v1238
    %1281 = vst.msk [vmem:[#allocation3 + $0x1c] sm:$0xf] %vm1273, %v1240
    %1282 = vst.msk [vmem:[#allocation3 + $0x20] sm:$0xf] %vm1273, %v1242
    %1283 = vst.msk [vmem:[#allocation3 + $0x24] sm:$0xf] %vm1273, %v1244
    %1284 = vst.msk [vmem:[#allocation3 + $0x28] sm:$0xf] %vm1273, %v1246
    %1285 = vst.msk [vmem:[#allocation3 + $0x2c] sm:$0xf] %vm1273, %v1248
    %1286 = vst.msk [vmem:[#allocation3 + $0x30] sm:$0xf] %vm1273, %v1250
    %1287 = vst.msk [vmem:[#allocation3 + $0x34] sm:$0xf] %vm1273, %v1252
    %1288 = vst.msk [vmem:[#allocation3 + $0x38] sm:$0xf] %vm1273, %v1254
    %1289 = vst.msk [vmem:[#allocation3 + $0x3c] sm:$0xf] %vm1273, %v1256
    %v1290 = vld [vmem:[%s217] sm:$0xf]
    %v1291 = vld [vmem:[%s217 + $0x4] sm:$0x1]
    %v1292 = vld [vmem:[%s217 + $0x8] sm:$0xf]
    %v1293 = vld [vmem:[%s217 + $0xc] sm:$0x1]
    %v1294 = vld [vmem:[%s217 + $0x10] sm:$0xf]
    %v1295 = vld [vmem:[%s217 + $0x14] sm:$0x1]
    %v1296 = vld [vmem:[%s217 + $0x18] sm:$0xf]
    %v1297 = vld [vmem:[%s217 + $0x1c] sm:$0x1]
    %v1298 = vld [vmem:[%s217 + $0x20] sm:$0xf]
    %v1299 = vld [vmem:[%s217 + $0x24] sm:$0x1]
    %v1300 = vld [vmem:[%s217 + $0x28] sm:$0xf]
    %v1301 = vld [vmem:[%s217 + $0x2c] sm:$0x1]
    %v1302 = vld [vmem:[%s217 + $0x30] sm:$0xf]
    %v1303 = vld [vmem:[%s217 + $0x34] sm:$0x1]
    %v1304 = vld [vmem:[%s217 + $0x38] sm:$0xf]
    %v1305 = vld [vmem:[%s217 + $0x3c] sm:$0x1]
    %v1306 = vld [vmem:[%s217 + $0x50] sm:$0xf]
    %v1307 = vld [vmem:[%s217 + $0x54] sm:$0x1]
    %v1308 = vld [vmem:[%s217 + $0x58] sm:$0xf]
    %v1309 = vld [vmem:[%s217 + $0x5c] sm:$0x1]
    %v1310 = vld [vmem:[%s217 + $0x60] sm:$0xf]
    %v1311 = vld [vmem:[%s217 + $0x64] sm:$0x1]
    %v1312 = vld [vmem:[%s217 + $0x68] sm:$0xf]
    %v1313 = vld [vmem:[%s217 + $0x6c] sm:$0x1]
    %v1314 = vld [vmem:[%s217 + $0x70] sm:$0xf]
    %v1315 = vld [vmem:[%s217 + $0x74] sm:$0x1]
    %v1316 = vld [vmem:[%s217 + $0x78] sm:$0xf]
    %v1317 = vld [vmem:[%s217 + $0x7c] sm:$0x1]
    %v1318 = vld [vmem:[%s217 + $0x80] sm:$0xf]
    %v1319 = vld [vmem:[%s217 + $0x84] sm:$0x1]
    %v1320 = vld [vmem:[%s217 + $0x88] sm:$0xf]
    %v1321 = vld [vmem:[%s217 + $0x8c] sm:$0x1]
    %v1323 = vshrl.u32 %v1290, 16
    %v1325 = vrot.slane %v1323, 4
    %v1326 = vshll.u32 %v1290, 16
    %v1328 = vrot.slane %v1326, 5
    %v1329 = vor.u32 %v1325, %v1328
    %v1330 = vrot.slane %v1329, 4
    %v1332 = vshll.u32 %v1291, 16
    %v1334 = vrot.slane %v1332, 5
    %v1335 = vsel %vm707, %v1330, %v1334
    %v1337 = vshrl.u32 %v1292, 16
    %v1339 = vrot.slane %v1337, 4
    %v1340 = vshll.u32 %v1292, 16
    %v1342 = vrot.slane %v1340, 5
    %v1343 = vor.u32 %v1339, %v1342
    %v1344 = vrot.slane %v1343, 4
    %v1346 = vshll.u32 %v1293, 16
    %v1348 = vrot.slane %v1346, 5
    %v1349 = vsel %vm707, %v1344, %v1348
    %v1351 = vshrl.u32 %v1294, 16
    %v1353 = vrot.slane %v1351, 4
    %v1354 = vshll.u32 %v1294, 16
    %v1356 = vrot.slane %v1354, 5
    %v1357 = vor.u32 %v1353, %v1356
    %v1358 = vrot.slane %v1357, 4
    %v1360 = vshll.u32 %v1295, 16
    %v1362 = vrot.slane %v1360, 5
    %v1363 = vsel %vm707, %v1358, %v1362
    %v1365 = vshrl.u32 %v1296, 16
    %v1367 = vrot.slane %v1365, 4
    %v1368 = vshll.u32 %v1296, 16
    %v1370 = vrot.slane %v1368, 5
    %v1371 = vor.u32 %v1367, %v1370
    %v1372 = vrot.slane %v1371, 4
    %v1374 = vshll.u32 %v1297, 16
    %v1376 = vrot.slane %v1374, 5
    %v1377 = vsel %vm707, %v1372, %v1376
    %v1379 = vshrl.u32 %v1298, 16
    %v1381 = vrot.slane %v1379, 4
    %v1382 = vshll.u32 %v1298, 16
    %v1384 = vrot.slane %v1382, 5
    %v1385 = vor.u32 %v1381, %v1384
    %v1386 = vrot.slane %v1385, 4
    %v1388 = vshll.u32 %v1299, 16
    %v1390 = vrot.slane %v1388, 5
    %v1391 = vsel %vm707, %v1386, %v1390
    %v1393 = vshrl.u32 %v1300, 16
    %v1395 = vrot.slane %v1393, 4
    %v1396 = vshll.u32 %v1300, 16
    %v1398 = vrot.slane %v1396, 5
    %v1399 = vor.u32 %v1395, %v1398
    %v1400 = vrot.slane %v1399, 4
    %v1402 = vshll.u32 %v1301, 16
    %v1404 = vrot.slane %v1402, 5
    %v1405 = vsel %vm707, %v1400, %v1404
    %v1407 = vshrl.u32 %v1302, 16
    %v1409 = vrot.slane %v1407, 4
    %v1410 = vshll.u32 %v1302, 16
    %v1412 = vrot.slane %v1410, 5
    %v1413 = vor.u32 %v1409, %v1412
    %v1414 = vrot.slane %v1413, 4
    %v1416 = vshll.u32 %v1303, 16
    %v1418 = vrot.slane %v1416, 5
    %v1419 = vsel %vm707, %v1414, %v1418
    %v1421 = vshrl.u32 %v1304, 16
    %v1423 = vrot.slane %v1421, 4
    %v1424 = vshll.u32 %v1304, 16
    %v1426 = vrot.slane %v1424, 5
    %v1427 = vor.u32 %v1423, %v1426
    %v1428 = vrot.slane %v1427, 4
    %v1430 = vshll.u32 %v1305, 16
    %v1432 = vrot.slane %v1430, 5
    %v1433 = vsel %vm707, %v1428, %v1432
    %v1435 = vshrl.u32 %v1306, 16
    %v1437 = vrot.slane %v1435, 4
    %v1438 = vshll.u32 %v1306, 16
    %v1440 = vrot.slane %v1438, 5
    %v1441 = vor.u32 %v1437, %v1440
    %v1442 = vrot.slane %v1441, 4
    %v1444 = vshll.u32 %v1307, 16
    %v1446 = vrot.slane %v1444, 5
    %v1447 = vsel %vm707, %v1442, %v1446
    %v1449 = vshrl.u32 %v1308, 16
    %v1451 = vrot.slane %v1449, 4
    %v1452 = vshll.u32 %v1308, 16
    %v1454 = vrot.slane %v1452, 5
    %v1455 = vor.u32 %v1451, %v1454
    %v1456 = vrot.slane %v1455, 4
    %v1458 = vshll.u32 %v1309, 16
    %v1460 = vrot.slane %v1458, 5
    %v1461 = vsel %vm707, %v1456, %v1460
    %v1463 = vshrl.u32 %v1310, 16
    %v1465 = vrot.slane %v1463, 4
    %v1466 = vshll.u32 %v1310, 16
    %v1468 = vrot.slane %v1466, 5
    %v1469 = vor.u32 %v1465, %v1468
    %v1470 = vrot.slane %v1469, 4
    %v1472 = vshll.u32 %v1311, 16
    %v1474 = vrot.slane %v1472, 5
    %v1475 = vsel %vm707, %v1470, %v1474
    %v1477 = vshrl.u32 %v1312, 16
    %v1479 = vrot.slane %v1477, 4
    %v1480 = vshll.u32 %v1312, 16
    %v1482 = vrot.slane %v1480, 5
    %v1483 = vor.u32 %v1479, %v1482
    %v1484 = vrot.slane %v1483, 4
    %v1486 = vshll.u32 %v1313, 16
    %v1488 = vrot.slane %v1486, 5
    %v1489 = vsel %vm707, %v1484, %v1488
    %v1491 = vshrl.u32 %v1314, 16
    %v1493 = vrot.slane %v1491, 4
    %v1494 = vshll.u32 %v1314, 16
    %v1496 = vrot.slane %v1494, 5
    %v1497 = vor.u32 %v1493, %v1496
    %v1498 = vrot.slane %v1497, 4
    %v1500 = vshll.u32 %v1315, 16
    %v1502 = vrot.slane %v1500, 5
    %v1503 = vsel %vm707, %v1498, %v1502
    %v1505 = vshrl.u32 %v1316, 16
    %v1507 = vrot.slane %v1505, 4
    %v1508 = vshll.u32 %v1316, 16
    %v1510 = vrot.slane %v1508, 5
    %v1511 = vor.u32 %v1507, %v1510
    %v1512 = vrot.slane %v1511, 4
    %v1514 = vshll.u32 %v1317, 16
    %v1516 = vrot.slane %v1514, 5
    %v1517 = vsel %vm707, %v1512, %v1516
    %v1519 = vshrl.u32 %v1318, 16
    %v1521 = vrot.slane %v1519, 4
    %v1522 = vshll.u32 %v1318, 16
    %v1524 = vrot.slane %v1522, 5
    %v1525 = vor.u32 %v1521, %v1524
    %v1526 = vrot.slane %v1525, 4
    %v1528 = vshll.u32 %v1319, 16
    %v1530 = vrot.slane %v1528, 5
    %v1531 = vsel %vm707, %v1526, %v1530
    %v1533 = vshrl.u32 %v1320, 16
    %v1535 = vrot.slane %v1533, 4
    %v1536 = vshll.u32 %v1320, 16
    %v1538 = vrot.slane %v1536, 5
    %v1539 = vor.u32 %v1535, %v1538
    %v1540 = vrot.slane %v1539, 4
    %v1542 = vshll.u32 %v1321, 16
    %v1544 = vrot.slane %v1542, 5
    %v1545 = vsel %vm707, %v1540, %v1544
    %1546 = vrot.lane.b32.xlu0 %v1335, 16
    %v1547 = vpop.permute.xlu0 %1546
    %1548 = vrot.lane.b32.xlu0 %v1349, 16
    %v1549 = vpop.permute.xlu0 %1548
    %1550 = vrot.lane.b32.xlu0 %v1363, 16
    %v1551 = vpop.permute.xlu0 %1550
    %1552 = vrot.lane.b32.xlu0 %v1377, 16
    %v1553 = vpop.permute.xlu0 %1552
    %1554 = vrot.lane.b32.xlu0 %v1391, 16
    %v1555 = vpop.permute.xlu0 %1554
    %1556 = vrot.lane.b32.xlu0 %v1405, 16
    %v1557 = vpop.permute.xlu0 %1556
    %1558 = vrot.lane.b32.xlu0 %v1419, 16
    %v1559 = vpop.permute.xlu0 %1558
    %1560 = vrot.lane.b32.xlu0 %v1433, 16
    %v1561 = vpop.permute.xlu0 %1560
    %1562 = vrot.lane.b32.xlu0 %v1447, 16
    %v1563 = vpop.permute.xlu0 %1562
    %1564 = vrot.lane.b32.xlu0 %v1461, 16
    %v1565 = vpop.permute.xlu0 %1564
    %1566 = vrot.lane.b32.xlu0 %v1475, 16
    %v1567 = vpop.permute.xlu0 %1566
    %1568 = vrot.lane.b32.xlu0 %v1489, 16
    %v1569 = vpop.permute.xlu0 %1568
    %1570 = vrot.lane.b32.xlu0 %v1503, 16
    %v1571 = vpop.permute.xlu0 %1570
    %1572 = vrot.lane.b32.xlu0 %v1517, 16
    %v1573 = vpop.permute.xlu0 %1572
    %1574 = vrot.lane.b32.xlu0 %v1531, 16
    %v1575 = vpop.permute.xlu0 %1574
    %1576 = vrot.lane.b32.xlu0 %v1545, 16
    %v1577 = vpop.permute.xlu0 %1576
    %vm1594 = vcmask 158848
    %1595 = vst.msk [vmem:[#allocation3] sm:$0xf] %vm1594, %v1547
    %1596 = vst.msk [vmem:[#allocation3 + $0x4] sm:$0xf] %vm1594, %v1549
    %1597 = vst.msk [vmem:[#allocation3 + $0x8] sm:$0xf] %vm1594, %v1551
    %1598 = vst.msk [vmem:[#allocation3 + $0xc] sm:$0xf] %vm1594, %v1553
    %1599 = vst.msk [vmem:[#allocation3 + $0x10] sm:$0xf] %vm1594, %v1555
    %1600 = vst.msk [vmem:[#allocation3 + $0x14] sm:$0xf] %vm1594, %v1557
    %1601 = vst.msk [vmem:[#allocation3 + $0x18] sm:$0xf] %vm1594, %v1559
    %1602 = vst.msk [vmem:[#allocation3 + $0x1c] sm:$0xf] %vm1594, %v1561
    %1603 = vst.msk [vmem:[#allocation3 + $0x20] sm:$0xf] %vm1594, %v1563
    %1604 = vst.msk [vmem:[#allocation3 + $0x24] sm:$0xf] %vm1594, %v1565
    %1605 = vst.msk [vmem:[#allocation3 + $0x28] sm:$0xf] %vm1594, %v1567
    %1606 = vst.msk [vmem:[#allocation3 + $0x2c] sm:$0xf] %vm1594, %v1569
    %1607 = vst.msk [vmem:[#allocation3 + $0x30] sm:$0xf] %vm1594, %v1571
    %1608 = vst.msk [vmem:[#allocation3 + $0x34] sm:$0xf] %vm1594, %v1573
    %1609 = vst.msk [vmem:[#allocation3 + $0x38] sm:$0xf] %vm1594, %v1575
    %1610 = vst.msk [vmem:[#allocation3 + $0x3c] sm:$0xf] %vm1594, %v1577
    %v1611 = vld [vmem:[%s217] sm:$0xe]
    %v1612 = vld [vmem:[%s217 + $0x4] sm:$0x1]
    %v1613 = vld [vmem:[%s217 + $0x8] sm:$0xe]
    %v1614 = vld [vmem:[%s217 + $0xc] sm:$0x1]
    %v1615 = vld [vmem:[%s217 + $0x10] sm:$0xe]
    %v1616 = vld [vmem:[%s217 + $0x14] sm:$0x1]
    %v1617 = vld [vmem:[%s217 + $0x18] sm:$0xe]
    %v1618 = vld [vmem:[%s217 + $0x1c] sm:$0x1]
    %v1619 = vld [vmem:[%s217 + $0x20] sm:$0xe]
    %v1620 = vld [vmem:[%s217 + $0x24] sm:$0x1]
    %v1621 = vld [vmem:[%s217 + $0x28] sm:$0xe]
    %v1622 = vld [vmem:[%s217 + $0x2c] sm:$0x1]
    %v1623 = vld [vmem:[%s217 + $0x30] sm:$0xe]
    %v1624 = vld [vmem:[%s217 + $0x34] sm:$0x1]
    %v1625 = vld [vmem:[%s217 + $0x38] sm:$0xe]
    %v1626 = vld [vmem:[%s217 + $0x3c] sm:$0x1]
    %v1627 = vld [vmem:[%s217 + $0x50] sm:$0xe]
    %v1628 = vld [vmem:[%s217 + $0x54] sm:$0x1]
    %v1629 = vld [vmem:[%s217 + $0x58] sm:$0xe]
    %v1630 = vld [vmem:[%s217 + $0x5c] sm:$0x1]
    %v1631 = vld [vmem:[%s217 + $0x60] sm:$0xe]
    %v1632 = vld [vmem:[%s217 + $0x64] sm:$0x1]
    %v1633 = vld [vmem:[%s217 + $0x68] sm:$0xe]
    %v1634 = vld [vmem:[%s217 + $0x6c] sm:$0x1]
    %v1635 = vld [vmem:[%s217 + $0x70] sm:$0xe]
    %v1636 = vld [vmem:[%s217 + $0x74] sm:$0x1]
    %v1637 = vld [vmem:[%s217 + $0x78] sm:$0xe]
    %v1638 = vld [vmem:[%s217 + $0x7c] sm:$0x1]
    %v1639 = vld [vmem:[%s217 + $0x80] sm:$0xe]
    %v1640 = vld [vmem:[%s217 + $0x84] sm:$0x1]
    %v1641 = vld [vmem:[%s217 + $0x88] sm:$0xe]
    %v1642 = vld [vmem:[%s217 + $0x8c] sm:$0x1]
    %v1675 = vrot.slane %v1611, 5
    %v1676 = vrot.slane %v1675, 4
    %v1677 = vrot.slane %v1612, 5
    %v1678 = vsel %vm1063, %v1676, %v1677
    %v1679 = vrot.slane %v1613, 5
    %v1680 = vrot.slane %v1679, 4
    %v1681 = vrot.slane %v1614, 5
    %v1682 = vsel %vm1063, %v1680, %v1681
    %v1683 = vrot.slane %v1615, 5
    %v1684 = vrot.slane %v1683, 4
    %v1685 = vrot.slane %v1616, 5
    %v1686 = vsel %vm1063, %v1684, %v1685
    %v1687 = vrot.slane %v1617, 5
    %v1688 = vrot.slane %v1687, 4
    %v1689 = vrot.slane %v1618, 5
    %v1690 = vsel %vm1063, %v1688, %v1689
    %v1691 = vrot.slane %v1619, 5
    %v1692 = vrot.slane %v1691, 4
    %v1693 = vrot.slane %v1620, 5
    %v1694 = vsel %vm1063, %v1692, %v1693
    %v1695 = vrot.slane %v1621, 5
    %v1696 = vrot.slane %v1695, 4
    %v1697 = vrot.slane %v1622, 5
    %v1698 = vsel %vm1063, %v1696, %v1697
    %v1699 = vrot.slane %v1623, 5
    %v1700 = vrot.slane %v1699, 4
    %v1701 = vrot.slane %v1624, 5
    %v1702 = vsel %vm1063, %v1700, %v1701
    %v1703 = vrot.slane %v1625, 5
    %v1704 = vrot.slane %v1703, 4
    %v1705 = vrot.slane %v1626, 5
    %v1706 = vsel %vm1063, %v1704, %v1705
    %v1707 = vrot.slane %v1627, 5
    %v1708 = vrot.slane %v1707, 4
    %v1709 = vrot.slane %v1628, 5
    %v1710 = vsel %vm1063, %v1708, %v1709
    %v1711 = vrot.slane %v1629, 5
    %v1712 = vrot.slane %v1711, 4
    %v1713 = vrot.slane %v1630, 5
    %v1714 = vsel %vm1063, %v1712, %v1713
    %v1715 = vrot.slane %v1631, 5
    %v1716 = vrot.slane %v1715, 4
    %v1717 = vrot.slane %v1632, 5
    %v1718 = vsel %vm1063, %v1716, %v1717
    %v1719 = vrot.slane %v1633, 5
    %v1720 = vrot.slane %v1719, 4
    %v1721 = vrot.slane %v1634, 5
    %v1722 = vsel %vm1063, %v1720, %v1721
    %v1723 = vrot.slane %v1635, 5
    %v1724 = vrot.slane %v1723, 4
    %v1725 = vrot.slane %v1636, 5
    %v1726 = vsel %vm1063, %v1724, %v1725
    %v1727 = vrot.slane %v1637, 5
    %v1728 = vrot.slane %v1727, 4
    %v1729 = vrot.slane %v1638, 5
    %v1730 = vsel %vm1063, %v1728, %v1729
    %v1731 = vrot.slane %v1639, 5
    %v1732 = vrot.slane %v1731, 4
    %v1733 = vrot.slane %v1640, 5
    %v1734 = vsel %vm1063, %v1732, %v1733
    %v1735 = vrot.slane %v1641, 5
    %v1736 = vrot.slane %v1735, 4
    %v1737 = vrot.slane %v1642, 5
    %v1738 = vsel %vm1063, %v1736, %v1737
    %1739 = vrot.lane.b32.xlu0 %v1678, 20
    %v1740 = vpop.permute.xlu0 %1739
    %1741 = vrot.lane.b32.xlu0 %v1682, 20
    %v1742 = vpop.permute.xlu0 %1741
    %1743 = vrot.lane.b32.xlu0 %v1686, 20
    %v1744 = vpop.permute.xlu0 %1743
    %1745 = vrot.lane.b32.xlu0 %v1690, 20
    %v1746 = vpop.permute.xlu0 %1745
    %1747 = vrot.lane.b32.xlu0 %v1694, 20
    %v1748 = vpop.permute.xlu0 %1747
    %1749 = vrot.lane.b32.xlu0 %v1698, 20
    %v1750 = vpop.permute.xlu0 %1749
    %1751 = vrot.lane.b32.xlu0 %v1702, 20
    %v1752 = vpop.permute.xlu0 %1751
    %1753 = vrot.lane.b32.xlu0 %v1706, 20
    %v1754 = vpop.permute.xlu0 %1753
    %1755 = vrot.lane.b32.xlu0 %v1710, 20
    %v1756 = vpop.permute.xlu0 %1755
    %1757 = vrot.lane.b32.xlu0 %v1714, 20
    %v1758 = vpop.permute.xlu0 %1757
    %1759 = vrot.lane.b32.xlu0 %v1718, 20
    %v1760 = vpop.permute.xlu0 %1759
    %1761 = vrot.lane.b32.xlu0 %v1722, 20
    %v1762 = vpop.permute.xlu0 %1761
    %1763 = vrot.lane.b32.xlu0 %v1726, 20
    %v1764 = vpop.permute.xlu0 %1763
    %1765 = vrot.lane.b32.xlu0 %v1730, 20
    %v1766 = vpop.permute.xlu0 %1765
    %1767 = vrot.lane.b32.xlu0 %v1734, 20
    %v1768 = vpop.permute.xlu0 %1767
    %1769 = vrot.lane.b32.xlu0 %v1738, 20
    %v1770 = vpop.permute.xlu0 %1769
    %vm1787 = vcmask 191648
    %1788 = vst.msk [vmem:[#allocation3] sm:$0xf] %vm1787, %v1740
    %1789 = vst.msk [vmem:[#allocation3 + $0x4] sm:$0xf] %vm1787, %v1742
    %1790 = vst.msk [vmem:[#allocation3 + $0x8] sm:$0xf] %vm1787, %v1744
    %1791 = vst.msk [vmem:[#allocation3 + $0xc] sm:$0xf] %vm1787, %v1746
    %1792 = vst.msk [vmem:[#allocation3 + $0x10] sm:$0xf] %vm1787, %v1748
    %1793 = vst.msk [vmem:[#allocation3 + $0x14] sm:$0xf] %vm1787, %v1750
    %1794 = vst.msk [vmem:[#allocation3 + $0x18] sm:$0xf] %vm1787, %v1752
    %1795 = vst.msk [vmem:[#allocation3 + $0x1c] sm:$0xf] %vm1787, %v1754
    %1796 = vst.msk [vmem:[#allocation3 + $0x20] sm:$0xf] %vm1787, %v1756
    %1797 = vst.msk [vmem:[#allocation3 + $0x24] sm:$0xf] %vm1787, %v1758
    %1798 = vst.msk [vmem:[#allocation3 + $0x28] sm:$0xf] %vm1787, %v1760
    %1799 = vst.msk [vmem:[#allocation3 + $0x2c] sm:$0xf] %vm1787, %v1762
    %1800 = vst.msk [vmem:[#allocation3 + $0x30] sm:$0xf] %vm1787, %v1764
    %1801 = vst.msk [vmem:[#allocation3 + $0x34] sm:$0xf] %vm1787, %v1766
    %1802 = vst.msk [vmem:[#allocation3 + $0x38] sm:$0xf] %vm1787, %v1768
    %1803 = vst.msk [vmem:[#allocation3 + $0x3c] sm:$0xf] %vm1787, %v1770
    %s1804 = scalar_lea.vmem [#allocation2], 16
    %v1805 = vld [vmem:[%s1804] sm:$0xf]
    %v1806 = vld [vmem:[%s1804 + $0x8] sm:$0xf]
    %v1807 = vld [vmem:[%s1804 + $0x10] sm:$0xf]
    %v1808 = vld [vmem:[%s1804 + $0x18] sm:$0xf]
    %v1809 = vld [vmem:[%s1804 + $0x20] sm:$0xf]
    %v1810 = vld [vmem:[%s1804 + $0x28] sm:$0xf]
    %v1811 = vld [vmem:[%s1804 + $0x30] sm:$0xf]
    %v1812 = vld [vmem:[%s1804 + $0x38] sm:$0xf]
    %v1813 = vld [vmem:[%s1804 + $0x50] sm:$0xf]
    %v1814 = vld [vmem:[%s1804 + $0x58] sm:$0xf]
    %v1815 = vld [vmem:[%s1804 + $0x60] sm:$0xf]
    %v1816 = vld [vmem:[%s1804 + $0x68] sm:$0xf]
    %v1817 = vld [vmem:[%s1804 + $0x70] sm:$0xf]
    %v1818 = vld [vmem:[%s1804 + $0x78] sm:$0xf]
    %v1819 = vld [vmem:[%s1804 + $0x80] sm:$0xf]
    %v1820 = vld [vmem:[%s1804 + $0x88] sm:$0xf]
    %1837 = vrot.lane.b32.xlu0 %v1805, 24
    %v1838 = vpop.permute.xlu0 %1837
    %1839 = vrot.lane.b32.xlu0 %v1806, 24
    %v1840 = vpop.permute.xlu0 %1839
    %1841 = vrot.lane.b32.xlu0 %v1807, 24
    %v1842 = vpop.permute.xlu0 %1841
    %1843 = vrot.lane.b32.xlu0 %v1808, 24
    %v1844 = vpop.permute.xlu0 %1843
    %1845 = vrot.lane.b32.xlu0 %v1809, 24
    %v1846 = vpop.permute.xlu0 %1845
    %1847 = vrot.lane.b32.xlu0 %v1810, 24
    %v1848 = vpop.permute.xlu0 %1847
    %1849 = vrot.lane.b32.xlu0 %v1811, 24
    %v1850 = vpop.permute.xlu0 %1849
    %1851 = vrot.lane.b32.xlu0 %v1812, 24
    %v1852 = vpop.permute.xlu0 %1851
    %1853 = vrot.lane.b32.xlu0 %v1813, 24
    %v1854 = vpop.permute.xlu0 %1853
    %1855 = vrot.lane.b32.xlu0 %v1814, 24
    %v1856 = vpop.permute.xlu0 %1855
    %1857 = vrot.lane.b32.xlu0 %v1815, 24
    %v1858 = vpop.permute.xlu0 %1857
    %1859 = vrot.lane.b32.xlu0 %v1816, 24
    %v1860 = vpop.permute.xlu0 %1859
    %1861 = vrot.lane.b32.xlu0 %v1817, 24
    %v1862 = vpop.permute.xlu0 %1861
    %1863 = vrot.lane.b32.xlu0 %v1818, 24
    %v1864 = vpop.permute.xlu0 %1863
    %1865 = vrot.lane.b32.xlu0 %v1819, 24
    %v1866 = vpop.permute.xlu0 %1865
    %1867 = vrot.lane.b32.xlu0 %v1820, 24
    %v1868 = vpop.permute.xlu0 %1867
    %vm1885 = vcmask 224448
    %1886 = vst.msk [vmem:[#allocation3] sm:$0xf] %vm1885, %v1838
    %1887 = vst.msk [vmem:[#allocation3 + $0x4] sm:$0xf] %vm1885, %v1840
    %1888 = vst.msk [vmem:[#allocation3 + $0x8] sm:$0xf] %vm1885, %v1842
    %1889 = vst.msk [vmem:[#allocation3 + $0xc] sm:$0xf] %vm1885, %v1844
    %1890 = vst.msk [vmem:[#allocation3 + $0x10] sm:$0xf] %vm1885, %v1846
    %1891 = vst.msk [vmem:[#allocation3 + $0x14] sm:$0xf] %vm1885, %v1848
    %1892 = vst.msk [vmem:[#allocation3 + $0x18] sm:$0xf] %vm1885, %v1850
    %1893 = vst.msk [vmem:[#allocation3 + $0x1c] sm:$0xf] %vm1885, %v1852
    %1894 = vst.msk [vmem:[#allocation3 + $0x20] sm:$0xf] %vm1885, %v1854
    %1895 = vst.msk [vmem:[#allocation3 + $0x24] sm:$0xf] %vm1885, %v1856
    %1896 = vst.msk [vmem:[#allocation3 + $0x28] sm:$0xf] %vm1885, %v1858
    %1897 = vst.msk [vmem:[#allocation3 + $0x2c] sm:$0xf] %vm1885, %v1860
    %1898 = vst.msk [vmem:[#allocation3 + $0x30] sm:$0xf] %vm1885, %v1862
    %1899 = vst.msk [vmem:[#allocation3 + $0x34] sm:$0xf] %vm1885, %v1864
    %1900 = vst.msk [vmem:[#allocation3 + $0x38] sm:$0xf] %vm1885, %v1866
    %1901 = vst.msk [vmem:[#allocation3 + $0x3c] sm:$0xf] %vm1885, %v1868
    %v1902 = vld [vmem:[%s1804] sm:$0xf]
    %v1903 = vld [vmem:[%s1804 + $0x4] sm:$0x1]
    %v1904 = vld [vmem:[%s1804 + $0x8] sm:$0xf]
    %v1905 = vld [vmem:[%s1804 + $0xc] sm:$0x1]
    %v1906 = vld [vmem:[%s1804 + $0x10] sm:$0xf]
    %v1907 = vld [vmem:[%s1804 + $0x14] sm:$0x1]
    %v1908 = vld [vmem:[%s1804 + $0x18] sm:$0xf]
    %v1909 = vld [vmem:[%s1804 + $0x1c] sm:$0x1]
    %v1910 = vld [vmem:[%s1804 + $0x20] sm:$0xf]
    %v1911 = vld [vmem:[%s1804 + $0x24] sm:$0x1]
    %v1912 = vld [vmem:[%s1804 + $0x28] sm:$0xf]
    %v1913 = vld [vmem:[%s1804 + $0x2c] sm:$0x1]
    %v1914 = vld [vmem:[%s1804 + $0x30] sm:$0xf]
    %v1915 = vld [vmem:[%s1804 + $0x34] sm:$0x1]
    %v1916 = vld [vmem:[%s1804 + $0x38] sm:$0xf]
    %v1917 = vld [vmem:[%s1804 + $0x3c] sm:$0x1]
    %v1918 = vld [vmem:[%s1804 + $0x50] sm:$0xf]
    %v1919 = vld [vmem:[%s1804 + $0x54] sm:$0x1]
    %v1920 = vld [vmem:[%s1804 + $0x58] sm:$0xf]
    %v1921 = vld [vmem:[%s1804 + $0x5c] sm:$0x1]
    %v1922 = vld [vmem:[%s1804 + $0x60] sm:$0xf]
    %v1923 = vld [vmem:[%s1804 + $0x64] sm:$0x1]
    %v1924 = vld [vmem:[%s1804 + $0x68] sm:$0xf]
    %v1925 = vld [vmem:[%s1804 + $0x6c] sm:$0x1]
    %v1926 = vld [vmem:[%s1804 + $0x70] sm:$0xf]
    %v1927 = vld [vmem:[%s1804 + $0x74] sm:$0x1]
    %v1928 = vld [vmem:[%s1804 + $0x78] sm:$0xf]
    %v1929 = vld [vmem:[%s1804 + $0x7c] sm:$0x1]
    %v1930 = vld [vmem:[%s1804 + $0x80] sm:$0xf]
    %v1931 = vld [vmem:[%s1804 + $0x84] sm:$0x1]
    %v1932 = vld [vmem:[%s1804 + $0x88] sm:$0xf]
    %v1933 = vld [vmem:[%s1804 + $0x8c] sm:$0x1]
    %v1935 = vshrl.u32 %v1902, 16
    %v1937 = vrot.slane %v1935, 4
    %v1938 = vshll.u32 %v1902, 16
    %v1940 = vrot.slane %v1938, 5
    %v1941 = vor.u32 %v1937, %v1940
    %v1942 = vrot.slane %v1941, 4
    %v1944 = vshll.u32 %v1903, 16
    %v1946 = vrot.slane %v1944, 5
    %v1947 = vsel %vm707, %v1942, %v1946
    %v1949 = vshrl.u32 %v1904, 16
    %v1951 = vrot.slane %v1949, 4
    %v1952 = vshll.u32 %v1904, 16
    %v1954 = vrot.slane %v1952, 5
    %v1955 = vor.u32 %v1951, %v1954
    %v1956 = vrot.slane %v1955, 4
    %v1958 = vshll.u32 %v1905, 16
    %v1960 = vrot.slane %v1958, 5
    %v1961 = vsel %vm707, %v1956, %v1960
    %v1963 = vshrl.u32 %v1906, 16
    %v1965 = vrot.slane %v1963, 4
    %v1966 = vshll.u32 %v1906, 16
    %v1968 = vrot.slane %v1966, 5
    %v1969 = vor.u32 %v1965, %v1968
    %v1970 = vrot.slane %v1969, 4
    %v1972 = vshll.u32 %v1907, 16
    %v1974 = vrot.slane %v1972, 5
    %v1975 = vsel %vm707, %v1970, %v1974
    %v1977 = vshrl.u32 %v1908, 16
    %v1979 = vrot.slane %v1977, 4
    %v1980 = vshll.u32 %v1908, 16
    %v1982 = vrot.slane %v1980, 5
    %v1983 = vor.u32 %v1979, %v1982
    %v1984 = vrot.slane %v1983, 4
    %v1986 = vshll.u32 %v1909, 16
    %v1988 = vrot.slane %v1986, 5
    %v1989 = vsel %vm707, %v1984, %v1988
    %v1991 = vshrl.u32 %v1910, 16
    %v1993 = vrot.slane %v1991, 4
    %v1994 = vshll.u32 %v1910, 16
    %v1996 = vrot.slane %v1994, 5
    %v1997 = vor.u32 %v1993, %v1996
    %v1998 = vrot.slane %v1997, 4
    %v2000 = vshll.u32 %v1911, 16
    %v2002 = vrot.slane %v2000, 5
    %v2003 = vsel %vm707, %v1998, %v2002
    %v2005 = vshrl.u32 %v1912, 16
    %v2007 = vrot.slane %v2005, 4
    %v2008 = vshll.u32 %v1912, 16
    %v2010 = vrot.slane %v2008, 5
    %v2011 = vor.u32 %v2007, %v2010
    %v2012 = vrot.slane %v2011, 4
    %v2014 = vshll.u32 %v1913, 16
    %v2016 = vrot.slane %v2014, 5
    %v2017 = vsel %vm707, %v2012, %v2016
    %v2019 = vshrl.u32 %v1914, 16
    %v2021 = vrot.slane %v2019, 4
    %v2022 = vshll.u32 %v1914, 16
    %v2024 = vrot.slane %v2022, 5
    %v2025 = vor.u32 %v2021, %v2024
    %v2026 = vrot.slane %v2025, 4
    %v2028 = vshll.u32 %v1915, 16
    %v2030 = vrot.slane %v2028, 5
    %v2031 = vsel %vm707, %v2026, %v2030
    %v2033 = vshrl.u32 %v1916, 16
    %v2035 = vrot.slane %v2033, 4
    %v2036 = vshll.u32 %v1916, 16
    %v2038 = vrot.slane %v2036, 5
    %v2039 = vor.u32 %v2035, %v2038
    %v2040 = vrot.slane %v2039, 4
    %v2042 = vshll.u32 %v1917, 16
    %v2044 = vrot.slane %v2042, 5
    %v2045 = vsel %vm707, %v2040, %v2044
    %v2047 = vshrl.u32 %v1918, 16
    %v2049 = vrot.slane %v2047, 4
    %v2050 = vshll.u32 %v1918, 16
    %v2052 = vrot.slane %v2050, 5
    %v2053 = vor.u32 %v2049, %v2052
    %v2054 = vrot.slane %v2053, 4
    %v2056 = vshll.u32 %v1919, 16
    %v2058 = vrot.slane %v2056, 5
    %v2059 = vsel %vm707, %v2054, %v2058
    %v2061 = vshrl.u32 %v1920, 16
    %v2063 = vrot.slane %v2061, 4
    %v2064 = vshll.u32 %v1920, 16
    %v2066 = vrot.slane %v2064, 5
    %v2067 = vor.u32 %v2063, %v2066
    %v2068 = vrot.slane %v2067, 4
    %v2070 = vshll.u32 %v1921, 16
    %v2072 = vrot.slane %v2070, 5
    %v2073 = vsel %vm707, %v2068, %v2072
    %v2075 = vshrl.u32 %v1922, 16
    %v2077 = vrot.slane %v2075, 4
    %v2078 = vshll.u32 %v1922, 16
    %v2080 = vrot.slane %v2078, 5
    %v2081 = vor.u32 %v2077, %v2080
    %v2082 = vrot.slane %v2081, 4
    %v2084 = vshll.u32 %v1923, 16
    %v2086 = vrot.slane %v2084, 5
    %v2087 = vsel %vm707, %v2082, %v2086
    %v2089 = vshrl.u32 %v1924, 16
    %v2091 = vrot.slane %v2089, 4
    %v2092 = vshll.u32 %v1924, 16
    %v2094 = vrot.slane %v2092, 5
    %v2095 = vor.u32 %v2091, %v2094
    %v2096 = vrot.slane %v2095, 4
    %v2098 = vshll.u32 %v1925, 16
    %v2100 = vrot.slane %v2098, 5
    %v2101 = vsel %vm707, %v2096, %v2100
    %v2103 = vshrl.u32 %v1926, 16
    %v2105 = vrot.slane %v2103, 4
    %v2106 = vshll.u32 %v1926, 16
    %v2108 = vrot.slane %v2106, 5
    %v2109 = vor.u32 %v2105, %v2108
    %v2110 = vrot.slane %v2109, 4
    %v2112 = vshll.u32 %v1927, 16
    %v2114 = vrot.slane %v2112, 5
    %v2115 = vsel %vm707, %v2110, %v2114
    %v2117 = vshrl.u32 %v1928, 16
    %v2119 = vrot.slane %v2117, 4
    %v2120 = vshll.u32 %v1928, 16
    %v2122 = vrot.slane %v2120, 5
    %v2123 = vor.u32 %v2119, %v2122
    %v2124 = vrot.slane %v2123, 4
    %v2126 = vshll.u32 %v1929, 16
    %v2128 = vrot.slane %v2126, 5
    %v2129 = vsel %vm707, %v2124, %v2128
    %v2131 = vshrl.u32 %v1930, 16
    %v2133 = vrot.slane %v2131, 4
    %v2134 = vshll.u32 %v1930, 16
    %v2136 = vrot.slane %v2134, 5
    %v2137 = vor.u32 %v2133, %v2136
    %v2138 = vrot.slane %v2137, 4
    %v2140 = vshll.u32 %v1931, 16
    %v2142 = vrot.slane %v2140, 5
    %v2143 = vsel %vm707, %v2138, %v2142
    %v2145 = vshrl.u32 %v1932, 16
    %v2147 = vrot.slane %v2145, 4
    %v2148 = vshll.u32 %v1932, 16
    %v2150 = vrot.slane %v2148, 5
    %v2151 = vor.u32 %v2147, %v2150
    %v2152 = vrot.slane %v2151, 4
    %v2154 = vshll.u32 %v1933, 16
    %v2156 = vrot.slane %v2154, 5
    %v2157 = vsel %vm707, %v2152, %v2156
    %2158 = vrot.lane.b32.xlu0 %v1947, 28
    %v2159 = vpop.permute.xlu0 %2158
    %2160 = vrot.lane.b32.xlu0 %v1961, 28
    %v2161 = vpop.permute.xlu0 %2160
    %2162 = vrot.lane.b32.xlu0 %v1975, 28
    %v2163 = vpop.permute.xlu0 %2162
    %2164 = vrot.lane.b32.xlu0 %v1989, 28
    %v2165 = vpop.permute.xlu0 %2164
    %2166 = vrot.lane.b32.xlu0 %v2003, 28
    %v2167 = vpop.permute.xlu0 %2166
    %2168 = vrot.lane.b32.xlu0 %v2017, 28
    %v2169 = vpop.permute.xlu0 %2168
    %2170 = vrot.lane.b32.xlu0 %v2031, 28
    %v2171 = vpop.permute.xlu0 %2170
    %2172 = vrot.lane.b32.xlu0 %v2045, 28
    %v2173 = vpop.permute.xlu0 %2172
    %2174 = vrot.lane.b32.xlu0 %v2059, 28
    %v2175 = vpop.permute.xlu0 %2174
    %2176 = vrot.lane.b32.xlu0 %v2073, 28
    %v2177 = vpop.permute.xlu0 %2176
    %2178 = vrot.lane.b32.xlu0 %v2087, 28
    %v2179 = vpop.permute.xlu0 %2178
    %2180 = vrot.lane.b32.xlu0 %v2101, 28
    %v2181 = vpop.permute.xlu0 %2180
    %2182 = vrot.lane.b32.xlu0 %v2115, 28
    %v2183 = vpop.permute.xlu0 %2182
    %2184 = vrot.lane.b32.xlu0 %v2129, 28
    %v2185 = vpop.permute.xlu0 %2184
    %2186 = vrot.lane.b32.xlu0 %v2143, 28
    %v2187 = vpop.permute.xlu0 %2186
    %2188 = vrot.lane.b32.xlu0 %v2157, 28
    %v2189 = vpop.permute.xlu0 %2188
    %vm2206 = vcmask 257248
    %2207 = vst.msk [vmem:[#allocation3] sm:$0xf] %vm2206, %v2159
    %2208 = vst.msk [vmem:[#allocation3 + $0x4] sm:$0xf] %vm2206, %v2161
    %2209 = vst.msk [vmem:[#allocation3 + $0x8] sm:$0xf] %vm2206, %v2163
    %2210 = vst.msk [vmem:[#allocation3 + $0xc] sm:$0xf] %vm2206, %v2165
    %2211 = vst.msk [vmem:[#allocation3 + $0x10] sm:$0xf] %vm2206, %v2167
    %2212 = vst.msk [vmem:[#allocation3 + $0x14] sm:$0xf] %vm2206, %v2169
    %2213 = vst.msk [vmem:[#allocation3 + $0x18] sm:$0xf] %vm2206, %v2171
    %2214 = vst.msk [vmem:[#allocation3 + $0x1c] sm:$0xf] %vm2206, %v2173
    %2215 = vst.msk [vmem:[#allocation3 + $0x20] sm:$0xf] %vm2206, %v2175
    %2216 = vst.msk [vmem:[#allocation3 + $0x24] sm:$0xf] %vm2206, %v2177
    %2217 = vst.msk [vmem:[#allocation3 + $0x28] sm:$0xf] %vm2206, %v2179
    %2218 = vst.msk [vmem:[#allocation3 + $0x2c] sm:$0xf] %vm2206, %v2181
    %2219 = vst.msk [vmem:[#allocation3 + $0x30] sm:$0xf] %vm2206, %v2183
    %2220 = vst.msk [vmem:[#allocation3 + $0x34] sm:$0xf] %vm2206, %v2185
    %2221 = vst.msk [vmem:[#allocation3 + $0x38] sm:$0xf] %vm2206, %v2187
    %2222 = vst.msk [vmem:[#allocation3 + $0x3c] sm:$0xf] %vm2206, %v2189
    %v2223 = vld [vmem:[%s1804] sm:$0xe]
    %v2224 = vld [vmem:[%s1804 + $0x4] sm:$0x1]
    %v2225 = vld [vmem:[%s1804 + $0x8] sm:$0xe]
    %v2226 = vld [vmem:[%s1804 + $0xc] sm:$0x1]
    %v2227 = vld [vmem:[%s1804 + $0x10] sm:$0xe]
    %v2228 = vld [vmem:[%s1804 + $0x14] sm:$0x1]
    %v2229 = vld [vmem:[%s1804 + $0x18] sm:$0xe]
    %v2230 = vld [vmem:[%s1804 + $0x1c] sm:$0x1]
    %v2231 = vld [vmem:[%s1804 + $0x20] sm:$0xe]
    %v2232 = vld [vmem:[%s1804 + $0x24] sm:$0x1]
    %v2233 = vld [vmem:[%s1804 + $0x28] sm:$0xe]
    %v2234 = vld [vmem:[%s1804 + $0x2c] sm:$0x1]
    %v2235 = vld [vmem:[%s1804 + $0x30] sm:$0xe]
    %v2236 = vld [vmem:[%s1804 + $0x34] sm:$0x1]
    %v2237 = vld [vmem:[%s1804 + $0x38] sm:$0xe]
    %v2238 = vld [vmem:[%s1804 + $0x3c] sm:$0x1]
    %v2239 = vld [vmem:[%s1804 + $0x50] sm:$0xe]
    %v2240 = vld [vmem:[%s1804 + $0x54] sm:$0x1]
    %v2241 = vld [vmem:[%s1804 + $0x58] sm:$0xe]
    %v2242 = vld [vmem:[%s1804 + $0x5c] sm:$0x1]
    %v2243 = vld [vmem:[%s1804 + $0x60] sm:$0xe]
    %v2244 = vld [vmem:[%s1804 + $0x64] sm:$0x1]
    %v2245 = vld [vmem:[%s1804 + $0x68] sm:$0xe]
    %v2246 = vld [vmem:[%s1804 + $0x6c] sm:$0x1]
    %v2247 = vld [vmem:[%s1804 + $0x70] sm:$0xe]
    %v2248 = vld [vmem:[%s1804 + $0x74] sm:$0x1]
    %v2249 = vld [vmem:[%s1804 + $0x78] sm:$0xe]
    %v2250 = vld [vmem:[%s1804 + $0x7c] sm:$0x1]
    %v2251 = vld [vmem:[%s1804 + $0x80] sm:$0xe]
    %v2252 = vld [vmem:[%s1804 + $0x84] sm:$0x1]
    %v2253 = vld [vmem:[%s1804 + $0x88] sm:$0xe]
    %v2254 = vld [vmem:[%s1804 + $0x8c] sm:$0x1]
    %v2287 = vrot.slane %v2223, 5
    %v2288 = vrot.slane %v2287, 4
    %v2289 = vrot.slane %v2224, 5
    %v2290 = vsel %vm1063, %v2288, %v2289
    %v2291 = vrot.slane %v2225, 5
    %v2292 = vrot.slane %v2291, 4
    %v2293 = vrot.slane %v2226, 5
    %v2294 = vsel %vm1063, %v2292, %v2293
    %v2295 = vrot.slane %v2227, 5
    %v2296 = vrot.slane %v2295, 4
    %v2297 = vrot.slane %v2228, 5
    %v2298 = vsel %vm1063, %v2296, %v2297
    %v2299 = vrot.slane %v2229, 5
    %v2300 = vrot.slane %v2299, 4
    %v2301 = vrot.slane %v2230, 5
    %v2302 = vsel %vm1063, %v2300, %v2301
    %v2303 = vrot.slane %v2231, 5
    %v2304 = vrot.slane %v2303, 4
    %v2305 = vrot.slane %v2232, 5
    %v2306 = vsel %vm1063, %v2304, %v2305
    %v2307 = vrot.slane %v2233, 5
    %v2308 = vrot.slane %v2307, 4
    %v2309 = vrot.slane %v2234, 5
    %v2310 = vsel %vm1063, %v2308, %v2309
    %v2311 = vrot.slane %v2235, 5
    %v2312 = vrot.slane %v2311, 4
    %v2313 = vrot.slane %v2236, 5
    %v2314 = vsel %vm1063, %v2312, %v2313
    %v2315 = vrot.slane %v2237, 5
    %v2316 = vrot.slane %v2315, 4
    %v2317 = vrot.slane %v2238, 5
    %v2318 = vsel %vm1063, %v2316, %v2317
    %v2319 = vrot.slane %v2239, 5
    %v2320 = vrot.slane %v2319, 4
    %v2321 = vrot.slane %v2240, 5
    %v2322 = vsel %vm1063, %v2320, %v2321
    %v2323 = vrot.slane %v2241, 5
    %v2324 = vrot.slane %v2323, 4
    %v2325 = vrot.slane %v2242, 5
    %v2326 = vsel %vm1063, %v2324, %v2325
    %v2327 = vrot.slane %v2243, 5
    %v2328 = vrot.slane %v2327, 4
    %v2329 = vrot.slane %v2244, 5
    %v2330 = vsel %vm1063, %v2328, %v2329
    %v2331 = vrot.slane %v2245, 5
    %v2332 = vrot.slane %v2331, 4
    %v2333 = vrot.slane %v2246, 5
    %v2334 = vsel %vm1063, %v2332, %v2333
    %v2335 = vrot.slane %v2247, 5
    %v2336 = vrot.slane %v2335, 4
    %v2337 = vrot.slane %v2248, 5
    %v2338 = vsel %vm1063, %v2336, %v2337
    %v2339 = vrot.slane %v2249, 5
    %v2340 = vrot.slane %v2339, 4
    %v2341 = vrot.slane %v2250, 5
    %v2342 = vsel %vm1063, %v2340, %v2341
    %v2343 = vrot.slane %v2251, 5
    %v2344 = vrot.slane %v2343, 4
    %v2345 = vrot.slane %v2252, 5
    %v2346 = vsel %vm1063, %v2344, %v2345
    %v2347 = vrot.slane %v2253, 5
    %v2348 = vrot.slane %v2347, 4
    %v2349 = vrot.slane %v2254, 5
    %v2350 = vsel %vm1063, %v2348, %v2349
    %2351 = vrot.lane.b32.xlu0 %v2290, 32
    %v2352 = vpop.permute.xlu0 %2351
    %2353 = vrot.lane.b32.xlu0 %v2294, 32
    %v2354 = vpop.permute.xlu0 %2353
    %2355 = vrot.lane.b32.xlu0 %v2298, 32
    %v2356 = vpop.permute.xlu0 %2355
    %2357 = vrot.lane.b32.xlu0 %v2302, 32
    %v2358 = vpop.permute.xlu0 %2357
    %2359 = vrot.lane.b32.xlu0 %v2306, 32
    %v2360 = vpop.permute.xlu0 %2359
    %2361 = vrot.lane.b32.xlu0 %v2310, 32
    %v2362 = vpop.permute.xlu0 %2361
    %2363 = vrot.lane.b32.xlu0 %v2314, 32
    %v2364 = vpop.permute.xlu0 %2363
    %2365 = vrot.lane.b32.xlu0 %v2318, 32
    %v2366 = vpop.permute.xlu0 %2365
    %2367 = vrot.lane.b32.xlu0 %v2322, 32
    %v2368 = vpop.permute.xlu0 %2367
    %2369 = vrot.lane.b32.xlu0 %v2326, 32
    %v2370 = vpop.permute.xlu0 %2369
    %2371 = vrot.lane.b32.xlu0 %v2330, 32
    %v2372 = vpop.permute.xlu0 %2371
    %2373 = vrot.lane.b32.xlu0 %v2334, 32
    %v2374 = vpop.permute.xlu0 %2373
    %2375 = vrot.lane.b32.xlu0 %v2338, 32
    %v2376 = vpop.permute.xlu0 %2375
    %2377 = vrot.lane.b32.xlu0 %v2342, 32
    %v2378 = vpop.permute.xlu0 %2377
    %2379 = vrot.lane.b32.xlu0 %v2346, 32
    %v2380 = vpop.permute.xlu0 %2379
    %2381 = vrot.lane.b32.xlu0 %v2350, 32
    %v2382 = vpop.permute.xlu0 %2381
    %vm2399 = vcmask 290048
    %2400 = vst.msk [vmem:[#allocation3] sm:$0xf] %vm2399, %v2352
    %2401 = vst.msk [vmem:[#allocation3 + $0x4] sm:$0xf] %vm2399, %v2354
    %2402 = vst.msk [vmem:[#allocation3 + $0x8] sm:$0xf] %vm2399, %v2356
    %2403 = vst.msk [vmem:[#allocation3 + $0xc] sm:$0xf] %vm2399, %v2358
    %2404 = vst.msk [vmem:[#allocation3 + $0x10] sm:$0xf] %vm2399, %v2360
    %2405 = vst.msk [vmem:[#allocation3 + $0x14] sm:$0xf] %vm2399, %v2362
    %2406 = vst.msk [vmem:[#allocation3 + $0x18] sm:$0xf] %vm2399, %v2364
    %2407 = vst.msk [vmem:[#allocation3 + $0x1c] sm:$0xf] %vm2399, %v2366
    %2408 = vst.msk [vmem:[#allocation3 + $0x20] sm:$0xf] %vm2399, %v2368
    %2409 = vst.msk [vmem:[#allocation3 + $0x24] sm:$0xf] %vm2399, %v2370
    %2410 = vst.msk [vmem:[#allocation3 + $0x28] sm:$0xf] %vm2399, %v2372
    %2411 = vst.msk [vmem:[#allocation3 + $0x2c] sm:$0xf] %vm2399, %v2374
    %2412 = vst.msk [vmem:[#allocation3 + $0x30] sm:$0xf] %vm2399, %v2376
    %2413 = vst.msk [vmem:[#allocation3 + $0x34] sm:$0xf] %vm2399, %v2378
    %2414 = vst.msk [vmem:[#allocation3 + $0x38] sm:$0xf] %vm2399, %v2380
    %2415 = vst.msk [vmem:[#allocation3 + $0x3c] sm:$0xf] %vm2399, %v2382
    %v2416 = vld [vmem:[#allocation3] sm:$0xf]
    %v2417 = vld [vmem:[#allocation3 + $0x4] sm:$0xf]
    %v2418 = vld [vmem:[#allocation3 + $0x8] sm:$0xf]
    %v2419 = vld [vmem:[#allocation3 + $0xc] sm:$0xf]
    %v2420 = vld [vmem:[#allocation3 + $0x10] sm:$0xf]
    %v2421 = vld [vmem:[#allocation3 + $0x14] sm:$0xf]
    %v2422 = vld [vmem:[#allocation3 + $0x18] sm:$0xf]
    %v2423 = vld [vmem:[#allocation3 + $0x1c] sm:$0xf]
    %v2424 = vld [vmem:[#allocation3 + $0x20] sm:$0xf]
    %v2425 = vld [vmem:[#allocation3 + $0x24] sm:$0xf]
    %v2426 = vld [vmem:[#allocation3 + $0x28] sm:$0xf]
    %v2427 = vld [vmem:[#allocation3 + $0x2c] sm:$0xf]
    %v2428 = vld [vmem:[#allocation3 + $0x30] sm:$0xf]
    %v2429 = vld [vmem:[#allocation3 + $0x34] sm:$0xf]
    %v2430 = vld [vmem:[#allocation3 + $0x38] sm:$0xf]
    %v2431 = vld [vmem:[#allocation3 + $0x3c] sm:$0xf]
    %v2432 = vld [vmem:[%s1] sm:$0xf]
    %v2433 = vld [vmem:[%s1 + $0x4] sm:$0xf]
    %v2434 = vld [vmem:[%s1 + $0x8] sm:$0xf]
    %v2435 = vld [vmem:[%s1 + $0xc] sm:$0xf]
    %v2436 = vld [vmem:[%s1 + $0x10] sm:$0x3]
    %v2437 = vld [vmem:[%s2] sm:$0x1]
    %v2439 = vlaneseq
    %v2440 = vshrl.u32 %v2439, 7
    %v2441 = vsub.s32 0, %v2440
    %v2442 = vrot.slane %v2437, %v2441
    %v2460 = vunpack.c.l.b16 %v2416
    %v2461 = vunpack.c.l.b16 %v2417
    %v2462 = vunpack.c.l.b16 %v2418
    %v2463 = vunpack.c.l.b16 %v2419
    %v2464 = vunpack.c.l.b16 %v2420
    %v2465 = vunpack.c.l.b16 %v2421
    %v2466 = vunpack.c.l.b16 %v2422
    %v2467 = vunpack.c.l.b16 %v2423
    %v2468 = vunpack.c.l.b16 %v2424
    %v2469 = vunpack.c.l.b16 %v2425
    %v2470 = vunpack.c.l.b16 %v2426
    %v2471 = vunpack.c.l.b16 %v2427
    %v2472 = vunpack.c.l.b16 %v2428
    %v2473 = vunpack.c.l.b16 %v2429
    %v2474 = vunpack.c.l.b16 %v2430
    %v2475 = vunpack.c.l.b16 %v2431
    %v2476 = vpack.c.b16 %v2461, %v2460
    %v2477 = vpack.c.b16 %v2463, %v2462
    %v2478 = vpack.c.b16 %v2465, %v2464
    %v2479 = vpack.c.b16 %v2467, %v2466
    %v2480 = vpack.c.b16 %v2469, %v2468
    %v2481 = vpack.c.b16 %v2471, %v2470
    %v2482 = vpack.c.b16 %v2473, %v2472
    %v2483 = vpack.c.b16 %v2475, %v2474
    %v2489 = vunpack.c.l.b16 %v2432
    %v2490 = vunpack.c.l.b16 %v2433
    %v2491 = vunpack.c.l.b16 %v2434
    %v2492 = vunpack.c.l.b16 %v2435
    %v2493 = vunpack.c.l.b16 %v2436
    %v2494 = vpack.c.b16 %v2490, %v2489
    %v2495 = vpack.c.b16 %v2492, %v2491
    %v2496 = vpack.c.b16 %v2493, %v2493
    %vm2499 = vcmask 293888
    %v2501 = vsel %vm2499, %v2476, 0
    %v2504 = vsel %vm2499, %v2477, 0
    %v2507 = vsel %vm2499, %v2478, 0
    %v2510 = vsel %vm2499, %v2479, 0
    %v2513 = vsel %vm2499, %v2480, 0
    %v2516 = vsel %vm2499, %v2481, 0
    %v2519 = vsel %vm2499, %v2482, 0
    %v2522 = vsel %vm2499, %v2483, 0
    %vm2524 = vcmask 1041408
    %v2526 = vsel %vm2524, %v2496, 0
    %2528 = vmatprep.subr.bf16.mxu0 0
    %2529 = vmatpush1.bf16.msra.mxu0 %v2494
    %2530 = vmatprep.subr.bf16.mxu0 0
    %2531 = vmatpush1.bf16.msra.mxu0 %v2495
    %2532 = vmatprep.subr.bf16.mxu0 0
    %2533 = vmatpush1.bf16.msra.mxu0 %v2526
    %2534 = vmatprep.subr.bf16.mxu0 0
    %2535 = vmatpush1.bf16.msra.mxu0 0
    %2536 = vmatprep.subr.bf16.mxu0 0
    %2537 = vmatpush1.bf16.msra.mxu0 0
    %2538 = vmatprep.subr.bf16.mxu0 0
    %2539 = vmatpush1.bf16.msra.mxu0 0
    %2540 = vmatprep.subr.bf16.mxu0 0
    %2541 = vmatpush1.bf16.msra.mxu0 0
    %2542 = vmatprep.subr.bf16.mxu0 0
    %2543 = vmatpush1.bf16.msra.mxu0 0
    %2544 = vmatprep.subr.bf16.mxu0 0
    %2545 = vmatpush1.bf16.msra.mxu0 0
    %2546 = vmatprep.subr.bf16.mxu0 0
    %2547 = vmatpush1.bf16.msra.mxu0 0
    %2548 = vmatprep.subr.bf16.mxu0 0
    %2549 = vmatpush1.bf16.msra.mxu0 0
    %2550 = vmatprep.subr.bf16.mxu0 0
    %2551 = vmatpush1.bf16.msra.mxu0 0
    %2552 = vmatprep.subr.bf16.mxu0 0
    %2553 = vmatpush1.bf16.msra.mxu0 0
    %2554 = vmatprep.subr.bf16.mxu0 0
    %2555 = vmatpush1.bf16.msra.mxu0 0
    %2556 = vmatprep.subr.bf16.mxu0 0
    %2557 = vmatpush1.bf16.msra.mxu0 0
    %2558 = vmatprep.subr.bf16.mxu0 0
    %2559 = vmatpush1.bf16.msra.mxu0 0
    %2560 = vmatprep.mubr.bf16.mxu0 0
    %2561 = vmatmul.mubr.bf16.gmra.mrb[0].mxu0 %v2501
    %v2562 = vpop.f32.mrb[0].mxu0
    %v2563 = vadd.f32 %v2442, %v2562
    %v2564 = vpop.f32.mrb[0].mxu0
    %v2565 = vpop.f32.mrb[0].mxu0
    %v2566 = vadd.f32 %v2442, %v2565
    %v2567 = vpop.f32.mrb[0].mxu0
    %2568 = vmatprep.mubr.bf16.mxu0 0
    %2569 = vmatmul.mubr.bf16.gmra.mrb[0].mxu0 %v2504
    %v2570 = vpop.f32.mrb[0].mxu0
    %v2571 = vadd.f32 %v2442, %v2570
    %v2572 = vpop.f32.mrb[0].mxu0
    %v2573 = vpop.f32.mrb[0].mxu0
    %v2574 = vadd.f32 %v2442, %v2573
    %v2575 = vpop.f32.mrb[0].mxu0
    %2576 = vmatprep.mubr.bf16.mxu0 0
    %2577 = vmatmul.mubr.bf16.gmra.mrb[0].mxu0 %v2507
    %v2578 = vpop.f32.mrb[0].mxu0
    %v2579 = vadd.f32 %v2442, %v2578
    %v2580 = vpop.f32.mrb[0].mxu0
    %v2581 = vpop.f32.mrb[0].mxu0
    %v2582 = vadd.f32 %v2442, %v2581
    %v2583 = vpop.f32.mrb[0].mxu0
    %2584 = vmatprep.mubr.bf16.mxu0 0
    %2585 = vmatmul.mubr.bf16.gmra.mrb[0].mxu0 %v2510
    %v2586 = vpop.f32.mrb[0].mxu0
    %v2587 = vadd.f32 %v2442, %v2586
    %v2588 = vpop.f32.mrb[0].mxu0
    %v2589 = vpop.f32.mrb[0].mxu0
    %v2590 = vadd.f32 %v2442, %v2589
    %v2591 = vpop.f32.mrb[0].mxu0
    %2592 = vmatprep.mubr.bf16.mxu0 0
    %2593 = vmatmul.mubr.bf16.gmra.mrb[0].mxu0 %v2513
    %v2594 = vpop.f32.mrb[0].mxu0
    %v2595 = vadd.f32 %v2442, %v2594
    %v2596 = vpop.f32.mrb[0].mxu0
    %v2597 = vpop.f32.mrb[0].mxu0
    %v2598 = vadd.f32 %v2442, %v2597
    %v2599 = vpop.f32.mrb[0].mxu0
    %2600 = vmatprep.mubr.bf16.mxu0 0
    %2601 = vmatmul.mubr.bf16.gmra.mrb[0].mxu0 %v2516
    %v2602 = vpop.f32.mrb[0].mxu0
    %v2603 = vadd.f32 %v2442, %v2602
    %v2604 = vpop.f32.mrb[0].mxu0
    %v2605 = vpop.f32.mrb[0].mxu0
    %v2606 = vadd.f32 %v2442, %v2605
    %v2607 = vpop.f32.mrb[0].mxu0
    %2608 = vmatprep.mubr.bf16.mxu0 0
    %2609 = vmatmul.mubr.bf16.gmra.mrb[0].mxu0 %v2519
    %v2610 = vpop.f32.mrb[0].mxu0
    %v2611 = vadd.f32 %v2442, %v2610
    %v2612 = vpop.f32.mrb[0].mxu0
    %v2613 = vpop.f32.mrb[0].mxu0
    %v2614 = vadd.f32 %v2442, %v2613
    %v2615 = vpop.f32.mrb[0].mxu0
    %2616 = vmatprep.mubr.bf16.mxu0 0
    %2617 = vmatmul.mubr.bf16.gmra.mrb[0].mxu0 %v2522
    %v2618 = vpop.f32.mrb[0].mxu0
    %v2619 = vadd.f32 %v2442, %v2618
    %v2620 = vpop.f32.mrb[0].mxu0
    %v2621 = vpop.f32.mrb[0].mxu0
    %v2622 = vadd.f32 %v2442, %v2621
    %v2623 = vpop.f32.mrb[0].mxu0
    %2624 = vdwg.mxu0
    %v2625 = vmax.f32 %v2563, 0.0
    %v2626 = vmax.f32 %v2566, 0.0
    %v2627 = vmax.f32 %v2571, 0.0
    %v2628 = vmax.f32 %v2574, 0.0
    %v2629 = vmax.f32 %v2579, 0.0
    %v2630 = vmax.f32 %v2582, 0.0
    %v2631 = vmax.f32 %v2587, 0.0
    %v2632 = vmax.f32 %v2590, 0.0
    %v2633 = vmax.f32 %v2595, 0.0
    %v2634 = vmax.f32 %v2598, 0.0
    %v2635 = vmax.f32 %v2603, 0.0
    %v2636 = vmax.f32 %v2606, 0.0
    %v2637 = vmax.f32 %v2611, 0.0
    %v2638 = vmax.f32 %v2614, 0.0
    %v2639 = vmax.f32 %v2619, 0.0
    %v2640 = vmax.f32 %v2622, 0.0
    %vm2641 = vcmask 64512
    %2642 = vst.msk [vmem:[#allocation7] sm:$0xff] %vm2641, %v2625
    %2643 = vst.msk [vmem:[#allocation7 + $0x8] sm:$0xff] %vm2641, %v2626
    %2644 = vst.msk [vmem:[#allocation7 + $0x10] sm:$0xff] %vm2641, %v2627
    %2645 = vst.msk [vmem:[#allocation7 + $0x18] sm:$0xff] %vm2641, %v2628
    %2646 = vst.msk [vmem:[#allocation7 + $0x20] sm:$0xff] %vm2641, %v2629
    %2647 = vst.msk [vmem:[#allocation7 + $0x28] sm:$0xff] %vm2641, %v2630
    %2648 = vst.msk [vmem:[#allocation7 + $0x30] sm:$0xff] %vm2641, %v2631
    %2649 = vst.msk [vmem:[#allocation7 + $0x38] sm:$0xff] %vm2641, %v2632
    %2650 = vst.msk [vmem:[#allocation7 + $0x40] sm:$0xff] %vm2641, %v2633
    %2651 = vst.msk [vmem:[#allocation7 + $0x48] sm:$0xff] %vm2641, %v2634
    %2652 = vst.msk [vmem:[#allocation7 + $0x50] sm:$0xff] %vm2641, %v2635
    %2653 = vst.msk [vmem:[#allocation7 + $0x58] sm:$0xff] %vm2641, %v2636
    %2654 = vst.msk [vmem:[#allocation7 + $0x60] sm:$0xff] %vm2641, %v2637
    %2655 = vst.msk [vmem:[#allocation7 + $0x68] sm:$0xff] %vm2641, %v2638
    %2656 = vst.msk [vmem:[#allocation7 + $0x70] sm:$0xff] %vm2641, %v2639
    %2657 = vst.msk [vmem:[#allocation7 + $0x78] sm:$0xff] %vm2641, %v2640
    // Predicated region
    $region18: #{tpu_custom_call.1} parent=1 // pred_check
      _
    $region19: #{tpu_custom_call.1} parent=1 // pred_check_branch
      %2659 = sbr.rel (0) target = $region21
    $region20: #{tpu_custom_call.1} parent=1 // pred_region
      %s2661 = ssub.s32 2048, 2048
      %2662 = vsyncadd [#allocation6], %s2661
      %s2663 = sshll.u32 [#allocation7], 4
      %s2664 = int_to_ptr.vmem [resolvable:$true] %s2663
      %2669 = dma.vmem_to_hbm [thread:$0]  %s2664, 2048, %s3, [#allocation6], 128, 128, 8
    $region21: #{tpu_custom_call.1} parent=1 // pred_fallthru
      _
    // Predicated region
    $region22: #{tpu_custom_call.1} parent=1 // pred_check
      _
    $region23: #{tpu_custom_call.1} parent=1 // pred_check_branch
      %2671 = sbr.rel (0) target = $region25
    $region24: #{tpu_custom_call.1} parent=1 // pred_region
      %2672 = dma.done [#allocation6], 2048
    $region25: #{tpu_custom_call.1} parent=1 // pred_fallthru
      _
    %2673 = vsyncpa [#allocation5], 1
    %2674 = vsyncpa [#allocation6], 1

</llo_original>
